<compile_context>
chip_gen: v7x
topology: tpu7x:2x2x1
jax: 0.10.0
libtpu: 0.0.40
codegen_flags: <defaults>
</compile_context>

<pallas_src>
import functools
import math

import jax
import jax.numpy as jnp
from jax import lax
from jax.experimental import pallas as pl
from jax.experimental.pallas import tpu as pltpu


# ----------------------------------------------------------------------------
# Fused encoder-block kernel (one program per batch element)
# ----------------------------------------------------------------------------

def _encoder_block_kernel(
    x_ref, pos_ref,
    w_emb_ref, b_emb_ref,          # Model.Embedding (input -> input)
    w_el_ref, b_el_ref,            # embedding_linear (input -> embed)
    w_qkv_ref, b_qkv_ref,          # fused QKV (embed -> 3*embed)
    w_o_ref, b_o_ref,              # MHA output projection (embed -> embed)
    g1_ref, beta1_ref,             # norm_attn
    w1_ref, b1f_ref,               # FFN layer 1
    w2_ref, b2f_ref,               # FFN layer 2
    g2_ref, beta2_ref,             # norm_ff
    o_ref,
    *, num_heads, causal,
):
    # ---- positional encoding + embeddings -----------------------------------
    x = x_ref[0] + pos_ref[0]                                          # (S, Din)
    emb = jnp.dot(x, w_emb_ref[...],
                  preferred_element_type=jnp.float32) + b_emb_ref[...]  # (S, Din)
    emb = jnp.dot(emb, w_el_ref[...],
                  preferred_element_type=jnp.float32) + b_el_ref[...]   # (S, E)

    s_len, e = emb.shape
    dh = e // num_heads
    scale = 1.0 / math.sqrt(dh)

    # ---- fused QKV projection ------------------------------------------------
    qkv = jnp.dot(emb, w_qkv_ref[...],
                  preferred_element_type=jnp.float32) + b_qkv_ref[...]  # (S, 3E)
    w_o = w_o_ref[...]                                                  # (E, E)

    if causal:
        row = lax.broadcasted_iota(jnp.int32, (s_len, s_len), 0)
        col = lax.broadcasted_iota(jnp.int32, (s_len, s_len), 1)

    # ---- multi-head scaled-dot attention (static unrolled head loop) --------
    # Output projection accumulated per head: att_x = sum_h o_h @ W_o[h] + b_o.
    att = jnp.zeros((s_len, e), jnp.float32)
    for h in range(num_heads):
        q_h = qkv[:, h * dh:(h + 1) * dh]                               # (S, Dh)
        k_h = qkv[:, e + h * dh: e + (h + 1) * dh]                      # (S, Dh)
        v_h = qkv[:, 2 * e + h * dh: 2 * e + (h + 1) * dh]              # (S, Dh)
        # contract on Dh without transposing K (no XLU transpose / VMEM copy)
        s = lax.dot_general(q_h, k_h, (((1,), (1,)), ((), ())),
                            preferred_element_type=jnp.float32) * scale  # (S, S)
        if causal:
            s = jnp.where(col <= row, s, jnp.float32(-1e30))
        m = jnp.max(s, axis=-1, keepdims=True)
        p = jnp.exp(s - m)
        p = p * pl.reciprocal(jnp.sum(p, axis=-1, keepdims=True), approx=True)
        o_h = jnp.dot(p, v_h, preferred_element_type=jnp.float32)        # (S, Dh)
        att = att + jnp.dot(o_h, w_o[h * dh:(h + 1) * dh, :],
                            preferred_element_type=jnp.float32)          # (S, E)
    att = att + b_o_ref[...]

    # ---- residual + LayerNorm (biased var, eps=1e-5, PyTorch default) -------
    def add_ln(a, b, g, beta):
        y = a + b
        mu = jnp.mean(y, axis=-1, keepdims=True)
        var = jnp.mean((y - mu) ** 2, axis=-1, keepdims=True)
        return (y - mu) * lax.rsqrt(var + 1e-5) * g + beta

    norm_x = add_ln(att, emb, g1_ref[...], beta1_ref[...])

    # ---- feed-forward --------------------------------------------------------
    h1 = jnp.maximum(
        jnp.dot(norm_x, w1_ref[...], preferred_element_type=jnp.float32)
        + b1f_ref[...], 0.0)
    ff = jnp.dot(h1, w2_ref[...],
                 preferred_element_type=jnp.float32) + b2f_ref[...]

    o_ref[0] = add_ln(ff, norm_x, g2_ref[...], beta2_ref[...])


# ----------------------------------------------------------------------------
# Wrapper: one pallas_call for the whole Encoder.forward
# ----------------------------------------------------------------------------

def encoder_forward(params, inputs, mask=False):
    b, s, din = inputs.shape
    e = params["embedding_linear"]["w"].shape[1]
    num_heads = params["num_heads"]
    dh = e // num_heads

    # Fuse Q/K/V projection weights into one (E, 3E) slab (host-side, once).
    w_qkv = jnp.concatenate([params["mha"]["q"]["w"],
                             params["mha"]["k"]["w"],
                             params["mha"]["v"]["w"]], axis=1)
    b_qkv = jnp.concatenate([params["mha"]["q"]["b"],
                             params["mha"]["k"]["b"],
                             params["mha"]["v"]["b"]], axis=1)

    operands = (
        inputs, params["p"],
        params["embedding"]["w"], params["embedding"]["b"],
        params["embedding_linear"]["w"], params["embedding_linear"]["b"],
        w_qkv, b_qkv,
        params["mha"]["o"]["w"], params["mha"]["o"]["b"],
        params["ln_attn"]["g"], params["ln_attn"]["b"],
        params["ff"]["w1"]["w"], params["ff"]["w1"]["b"],
        params["ff"]["w2"]["w"], params["ff"]["w2"]["b"],
        params["ln_ff"]["g"], params["ln_ff"]["b"],
    )

    # Block specs: batch-indexed slabs for inputs/outputs, full (constant) blocks
    # for weights -- constant index maps mean the weight DMAs are not re-issued
    # between grid steps.
    in_specs = [
        pl.BlockSpec((1, s, din), lambda bi: (bi, 0, 0)),   # inputs
        pl.BlockSpec((1, s, din), lambda bi: (0, 0, 0)),    # positional enc.
    ]
    for op in operands[2:]:
        in_specs.append(pl.BlockSpec(op.shape, lambda bi: (0, 0)))

    # Advisory cost estimate for XLA scheduling.
    matmul_flops = 2 * b * s * (din * din + din * e + e * (3 * e) + 3 * e * e)
    attn_flops = 2 * b * num_heads * (2 * s * s * dh)
    bytes_accessed = int(sum(op.size * op.dtype.itemsize for op in operands)
                         + b * s * e * 4)
    cost = pl.CostEstimate(flops=int(matmul_flops + attn_flops),
                           transcendentals=int(b * num_heads * s * s),
                           bytes_accessed=bytes_accessed)

    kernel = functools.partial(_encoder_block_kernel,
                               num_heads=num_heads, causal=bool(mask))

    return pl.pallas_call(
        kernel,
        grid=(b,),
        in_specs=in_specs,
        out_specs=pl.BlockSpec((1, s, e), lambda bi: (bi, 0, 0)),
        out_shape=jax.ShapeDtypeStruct((b, s, e), jnp.float32),
        compiler_params=pltpu.CompilerParams(
            dimension_semantics=("parallel",),   # v7x: split batch across 2 TCs
            vmem_limit_bytes=32 * 1024 * 1024,
        ),
        cost_estimate=cost,
    )(*operands)


# ----------------------------------------------------------------------------
# Deterministic parameter construction
# ----------------------------------------------------------------------------

def sinusoid_pe(seq, dim):
    pos = jnp.arange(seq, dtype=jnp.float32)[:, None]
    i = jnp.arange(dim // 2, dtype=jnp.float32)[None, :]
    angle = pos / jnp.power(10000.0, 2.0 * i / dim)
    pe = jnp.zeros((seq, dim), jnp.float32)
    pe = pe.at[:, 0::2].set(jnp.sin(angle))
    pe = pe.at[:, 1::2].set(jnp.cos(angle))
    return pe[None]  # (1, S, D) broadcast over batch


def init_params(key, seq_len, input_size, embed_size, num_heads):
    keys = iter(jax.random.split(key, 32))

    def dense(din, dout):
        w = 0.02 * jax.random.normal(next(keys), (din, dout), jnp.float32)
        b = jnp.zeros((1, dout), jnp.float32)
        return {"w": w, "b": b}

    def ln(d):
        return {"g": jnp.ones((1, d), jnp.float32),
                "b": jnp.zeros((1, d), jnp.float32)}

    # TODO(synk): Model.Position / Model.Embedding internals unknown; modeled as
    # sinusoidal PE and a Linear(input_size, input_size) respectively.
    return {
        "p": sinusoid_pe(seq_len, input_size),
        "embedding": dense(input_size, input_size),
        "embedding_linear": dense(input_size, embed_size),
        "mha": {"q": dense(embed_size, embed_size),
                "k": dense(embed_size, embed_size),
                "v": dense(embed_size, embed_size),
                "o": dense(embed_size, embed_size)},
        "ln_attn": ln(embed_size),
        "ff": {"w1": dense(embed_size, embed_size),
               "w2": dense(embed_size, embed_size)},
        "ln_ff": ln(embed_size),
        "num_heads": num_heads,
    }


# ----------------------------------------------------------------------------
# Main
# ----------------------------------------------------------------------------

if __name__ == "__main__":
    B = 2
    SEQ, INPUT = 8, 16
    EMBED, HEADS = 32, 4

    key = jax.random.PRNGKey(0)
    k_in, k_par = jax.random.split(key)
    inputs = jax.random.normal(k_in, (B, SEQ, INPUT), jnp.float32)
    params = init_params(k_par, SEQ, INPUT, EMBED, HEADS)

    out = encoder_forward(params, inputs, mask=False)
    out = jax.block_until_ready(out)
    assert out.shape == (B, SEQ, EMBED), out.shape
    assert bool(jnp.all(jnp.isfinite(out)))
    print("KERNEL_OK")
</pallas_src>

<mosaic_0001>
module attributes {stable_mosaic.version = 11 : i64} {
  func.func @_encoder_block_kernel(%arg0: i32, %arg1: memref<1x8x16xf32, #tpu.memory_space<vmem>>, %arg2: memref<1x8x16xf32, #tpu.memory_space<vmem>>, %arg3: memref<16x16xf32, #tpu.memory_space<vmem>>, %arg4: memref<1x16xf32, #tpu.memory_space<vmem>>, %arg5: memref<16x32xf32, #tpu.memory_space<vmem>>, %arg6: memref<1x32xf32, #tpu.memory_space<vmem>>, %arg7: memref<32x96xf32, #tpu.memory_space<vmem>>, %arg8: memref<1x96xf32, #tpu.memory_space<vmem>>, %arg9: memref<32x32xf32, #tpu.memory_space<vmem>>, %arg10: memref<1x32xf32, #tpu.memory_space<vmem>>, %arg11: memref<1x32xf32, #tpu.memory_space<vmem>>, %arg12: memref<1x32xf32, #tpu.memory_space<vmem>>, %arg13: memref<32x32xf32, #tpu.memory_space<vmem>>, %arg14: memref<1x32xf32, #tpu.memory_space<vmem>>, %arg15: memref<32x32xf32, #tpu.memory_space<vmem>>, %arg16: memref<1x32xf32, #tpu.memory_space<vmem>>, %arg17: memref<1x32xf32, #tpu.memory_space<vmem>>, %arg18: memref<1x32xf32, #tpu.memory_space<vmem>>, %arg19: memref<1x8x32xf32, #tpu.memory_space<vmem>>) attributes {dimension_semantics = [#tpu.dimension_semantics<parallel>], iteration_bounds = array<i64: 2>, scalar_prefetch = 0 : i64, scratch_operands = 0 : i64, tpu.core_type = #tpu.core_type<tc>, window_params = [{transform_indices = @transform_0, window_bounds = array<i64: 1, 8, 16>}, {pipeline_mode = #tpu.pipeline_mode<synchronous>, transform_indices = @transform_1, window_bounds = array<i64: 1, 8, 16>}, {pipeline_mode = #tpu.pipeline_mode<synchronous>, transform_indices = @transform_2, window_bounds = array<i64: 16, 16>}, {pipeline_mode = #tpu.pipeline_mode<synchronous>, transform_indices = @transform_3, window_bounds = array<i64: 1, 16>}, {pipeline_mode = #tpu.pipeline_mode<synchronous>, transform_indices = @transform_4, window_bounds = array<i64: 16, 32>}, {pipeline_mode = #tpu.pipeline_mode<synchronous>, transform_indices = @transform_5, window_bounds = array<i64: 1, 32>}, {pipeline_mode = #tpu.pipeline_mode<synchronous>, transform_indices = @transform_6, window_bounds = array<i64: 32, 96>}, {pipeline_mode = #tpu.pipeline_mode<synchronous>, transform_indices = @transform_7, window_bounds = array<i64: 1, 96>}, {pipeline_mode = #tpu.pipeline_mode<synchronous>, transform_indices = @transform_8, window_bounds = array<i64: 32, 32>}, {pipeline_mode = #tpu.pipeline_mode<synchronous>, transform_indices = @transform_9, window_bounds = array<i64: 1, 32>}, {pipeline_mode = #tpu.pipeline_mode<synchronous>, transform_indices = @transform_10, window_bounds = array<i64: 1, 32>}, {pipeline_mode = #tpu.pipeline_mode<synchronous>, transform_indices = @transform_11, window_bounds = array<i64: 1, 32>}, {pipeline_mode = #tpu.pipeline_mode<synchronous>, transform_indices = @transform_12, window_bounds = array<i64: 32, 32>}, {pipeline_mode = #tpu.pipeline_mode<synchronous>, transform_indices = @transform_13, window_bounds = array<i64: 1, 32>}, {pipeline_mode = #tpu.pipeline_mode<synchronous>, transform_indices = @transform_14, window_bounds = array<i64: 32, 32>}, {pipeline_mode = #tpu.pipeline_mode<synchronous>, transform_indices = @transform_15, window_bounds = array<i64: 1, 32>}, {pipeline_mode = #tpu.pipeline_mode<synchronous>, transform_indices = @transform_16, window_bounds = array<i64: 1, 32>}, {pipeline_mode = #tpu.pipeline_mode<synchronous>, transform_indices = @transform_17, window_bounds = array<i64: 1, 32>}, {transform_indices = @transform_18, window_bounds = array<i64: 1, 8, 32>}]} {
    %c0 = arith.constant 0 : index
    %c0_0 = arith.constant 0 : index
    %c0_1 = arith.constant 0 : index
    %0 = vector.load %arg1[%c0, %c0_0, %c0_1] : memref<1x8x16xf32, #tpu.memory_space<vmem>>, vector<1x8x16xf32>
    %1 = vector.shape_cast %0 : vector<1x8x16xf32> to vector<8x16xf32>
    %c0_2 = arith.constant 0 : index
    %c0_3 = arith.constant 0 : index
    %c0_4 = arith.constant 0 : index
    %2 = vector.load %arg2[%c0_2, %c0_3, %c0_4] : memref<1x8x16xf32, #tpu.memory_space<vmem>>, vector<1x8x16xf32>
    %3 = vector.shape_cast %2 : vector<1x8x16xf32> to vector<8x16xf32>
    %4 = arith.addf %1, %3 : vector<8x16xf32>
    %c0_5 = arith.constant 0 : index
    %c0_6 = arith.constant 0 : index
    %5 = vector.load %arg3[%c0_5, %c0_6] : memref<16x16xf32, #tpu.memory_space<vmem>>, vector<16x16xf32>
    %cst = arith.constant dense<0.000000e+00> : vector<8x16xf32>
    %6 = tpu.matmul %4, %5, %cst {dimension_numbers = #tpu.dot_dimension_numbers<[1], [0], [0], [1], [0, 0, 1, 1], [], []>} : vector<8x16xf32>, vector<16x16xf32>, vector<8x16xf32> -> vector<8x16xf32>
    %c0_7 = arith.constant 0 : index
    %c0_8 = arith.constant 0 : index
    %7 = vector.load %arg4[%c0_7, %c0_8] : memref<1x16xf32, #tpu.memory_space<vmem>>, vector<1x16xf32>
    %8 = vector.broadcast %7 : vector<1x16xf32> to vector<8x16xf32>
    %9 = arith.addf %6, %8 : vector<8x16xf32>
    %c0_9 = arith.constant 0 : index
    %c0_10 = arith.constant 0 : index
    %10 = vector.load %arg5[%c0_9, %c0_10] : memref<16x32xf32, #tpu.memory_space<vmem>>, vector<16x32xf32>
    %cst_11 = arith.constant dense<0.000000e+00> : vector<8x32xf32>
    %11 = tpu.matmul %9, %10, %cst_11 {dimension_numbers = #tpu.dot_dimension_numbers<[1], [0], [0], [1], [0, 0, 1, 1], [], []>} : vector<8x16xf32>, vector<16x32xf32>, vector<8x32xf32> -> vector<8x32xf32>
    %c0_12 = arith.constant 0 : index
    %c0_13 = arith.constant 0 : index
    %12 = vector.load %arg6[%c0_12, %c0_13] : memref<1x32xf32, #tpu.memory_space<vmem>>, vector<1x32xf32>
    %13 = vector.broadcast %12 : vector<1x32xf32> to vector<8x32xf32>
    %14 = arith.addf %11, %13 : vector<8x32xf32>
    %c0_14 = arith.constant 0 : index
    %c0_15 = arith.constant 0 : index
    %15 = vector.load %arg7[%c0_14, %c0_15] : memref<32x96xf32, #tpu.memory_space<vmem>>, vector<32x96xf32>
    %cst_16 = arith.constant dense<0.000000e+00> : vector<8x96xf32>
    %16 = tpu.matmul %14, %15, %cst_16 {dimension_numbers = #tpu.dot_dimension_numbers<[1], [0], [0], [1], [0, 0, 1, 1], [], []>} : vector<8x32xf32>, vector<32x96xf32>, vector<8x96xf32> -> vector<8x96xf32>
    %c0_17 = arith.constant 0 : index
    %c0_18 = arith.constant 0 : index
    %17 = vector.load %arg8[%c0_17, %c0_18] : memref<1x96xf32, #tpu.memory_space<vmem>>, vector<1x96xf32>
    %18 = vector.broadcast %17 : vector<1x96xf32> to vector<8x96xf32>
    %19 = arith.addf %16, %18 : vector<8x96xf32>
    %c0_19 = arith.constant 0 : index
    %c0_20 = arith.constant 0 : index
    %20 = vector.load %arg9[%c0_19, %c0_20] : memref<32x32xf32, #tpu.memory_space<vmem>>, vector<32x32xf32>
    %cst_21 = arith.constant 0.000000e+00 : f32
    %21 = vector.broadcast %cst_21 : f32 to vector<8x32xf32>
    %22 = vector.extract_strided_slice %19 {offsets = [0, 0], sizes = [8, 8], strides = [1, 1]} : vector<8x96xf32> to vector<8x8xf32>
    %23 = vector.extract_strided_slice %19 {offsets = [0, 32], sizes = [8, 8], strides = [1, 1]} : vector<8x96xf32> to vector<8x8xf32>
    %24 = vector.extract_strided_slice %19 {offsets = [0, 64], sizes = [8, 8], strides = [1, 1]} : vector<8x96xf32> to vector<8x8xf32>
    %cst_22 = arith.constant dense<0.000000e+00> : vector<8x8xf32>
    %25 = tpu.matmul %22, %23, %cst_22 {dimension_numbers = #tpu.dot_dimension_numbers<[1], [1], [0], [0], [0, 0, 1, 0], [], []>} : vector<8x8xf32>, vector<8x8xf32>, vector<8x8xf32> -> vector<8x8xf32>
    %cst_23 = arith.constant 0.353553385 : f32
    %26 = vector.broadcast %cst_23 : f32 to vector<8x8xf32>
    %27 = arith.mulf %25, %26 : vector<8x8xf32>
    %cst_24 = arith.constant dense<0xFF800000> : vector<8xf32>
    %28 = vector.multi_reduction <maximumf>, %27, %cst_24 [1] : vector<8x8xf32> to vector<8xf32>
    %29 = vector.shape_cast %28 : vector<8xf32> to vector<8x1xf32>
    %30 = vector.broadcast %29 : vector<8x1xf32> to vector<8x8xf32>
    %31 = arith.subf %27, %30 : vector<8x8xf32>
    %32 = math.exp %31 : vector<8x8xf32>
    %cst_25 = arith.constant dense<0.000000e+00> : vector<8xf32>
    %33 = vector.multi_reduction <add>, %32, %cst_25 [1] : vector<8x8xf32> to vector<8xf32>
    %34 = vector.shape_cast %33 : vector<8xf32> to vector<8x1xf32>
    %35 = tpu.reciprocal %34 {approx = true} : vector<8x1xf32> -> vector<8x1xf32>
    %36 = vector.broadcast %35 : vector<8x1xf32> to vector<8x8xf32>
    %37 = arith.mulf %32, %36 : vector<8x8xf32>
    %cst_26 = arith.constant dense<0.000000e+00> : vector<8x8xf32>
    %38 = tpu.matmul %37, %24, %cst_26 {dimension_numbers = #tpu.dot_dimension_numbers<[1], [0], [0], [1], [0, 0, 1, 1], [], []>} : vector<8x8xf32>, vector<8x8xf32>, vector<8x8xf32> -> vector<8x8xf32>
    %39 = vector.extract_strided_slice %20 {offsets = [0, 0], sizes = [8, 32], strides = [1, 1]} : vector<32x32xf32> to vector<8x32xf32>
    %cst_27 = arith.constant dense<0.000000e+00> : vector<8x32xf32>
    %40 = tpu.matmul %38, %39, %cst_27 {dimension_numbers = #tpu.dot_dimension_numbers<[1], [0], [0], [1], [0, 0, 1, 1], [], []>} : vector<8x8xf32>, vector<8x32xf32>, vector<8x32xf32> -> vector<8x32xf32>
    %41 = arith.addf %21, %40 : vector<8x32xf32>
    %42 = vector.extract_strided_slice %19 {offsets = [0, 8], sizes = [8, 8], strides = [1, 1]} : vector<8x96xf32> to vector<8x8xf32>
    %43 = vector.extract_strided_slice %19 {offsets = [0, 40], sizes = [8, 8], strides = [1, 1]} : vector<8x96xf32> to vector<8x8xf32>
    %44 = vector.extract_strided_slice %19 {offsets = [0, 72], sizes = [8, 8], strides = [1, 1]} : vector<8x96xf32> to vector<8x8xf32>
    %cst_28 = arith.constant dense<0.000000e+00> : vector<8x8xf32>
    %45 = tpu.matmul %42, %43, %cst_28 {dimension_numbers = #tpu.dot_dimension_numbers<[1], [1], [0], [0], [0, 0, 1, 0], [], []>} : vector<8x8xf32>, vector<8x8xf32>, vector<8x8xf32> -> vector<8x8xf32>
    %cst_29 = arith.constant 0.353553385 : f32
    %46 = vector.broadcast %cst_29 : f32 to vector<8x8xf32>
    %47 = arith.mulf %45, %46 : vector<8x8xf32>
    %cst_30 = arith.constant dense<0xFF800000> : vector<8xf32>
    %48 = vector.multi_reduction <maximumf>, %47, %cst_30 [1] : vector<8x8xf32> to vector<8xf32>
    %49 = vector.shape_cast %48 : vector<8xf32> to vector<8x1xf32>
    %50 = vector.broadcast %49 : vector<8x1xf32> to vector<8x8xf32>
    %51 = arith.subf %47, %50 : vector<8x8xf32>
    %52 = math.exp %51 : vector<8x8xf32>
    %cst_31 = arith.constant dense<0.000000e+00> : vector<8xf32>
    %53 = vector.multi_reduction <add>, %52, %cst_31 [1] : vector<8x8xf32> to vector<8xf32>
    %54 = vector.shape_cast %53 : vector<8xf32> to vector<8x1xf32>
    %55 = tpu.reciprocal %54 {approx = true} : vector<8x1xf32> -> vector<8x1xf32>
    %56 = vector.broadcast %55 : vector<8x1xf32> to vector<8x8xf32>
    %57 = arith.mulf %52, %56 : vector<8x8xf32>
    %cst_32 = arith.constant dense<0.000000e+00> : vector<8x8xf32>
    %58 = tpu.matmul %57, %44, %cst_32 {dimension_numbers = #tpu.dot_dimension_numbers<[1], [0], [0], [1], [0, 0, 1, 1], [], []>} : vector<8x8xf32>, vector<8x8xf32>, vector<8x8xf32> -> vector<8x8xf32>
    %59 = vector.extract_strided_slice %20 {offsets = [8, 0], sizes = [8, 32], strides = [1, 1]} : vector<32x32xf32> to vector<8x32xf32>
    %cst_33 = arith.constant dense<0.000000e+00> : vector<8x32xf32>
    %60 = tpu.matmul %58, %59, %cst_33 {dimension_numbers = #tpu.dot_dimension_numbers<[1], [0], [0], [1], [0, 0, 1, 1], [], []>} : vector<8x8xf32>, vector<8x32xf32>, vector<8x32xf32> -> vector<8x32xf32>
    %61 = arith.addf %41, %60 : vector<8x32xf32>
    %62 = vector.extract_strided_slice %19 {offsets = [0, 16], sizes = [8, 8], strides = [1, 1]} : vector<8x96xf32> to vector<8x8xf32>
    %63 = vector.extract_strided_slice %19 {offsets = [0, 48], sizes = [8, 8], strides = [1, 1]} : vector<8x96xf32> to vector<8x8xf32>
    %64 = vector.extract_strided_slice %19 {offsets = [0, 80], sizes = [8, 8], strides = [1, 1]} : vector<8x96xf32> to vector<8x8xf32>
    %cst_34 = arith.constant dense<0.000000e+00> : vector<8x8xf32>
    %65 = tpu.matmul %62, %63, %cst_34 {dimension_numbers = #tpu.dot_dimension_numbers<[1], [1], [0], [0], [0, 0, 1, 0], [], []>} : vector<8x8xf32>, vector<8x8xf32>, vector<8x8xf32> -> vector<8x8xf32>
    %cst_35 = arith.constant 0.353553385 : f32
    %66 = vector.broadcast %cst_35 : f32 to vector<8x8xf32>
    %67 = arith.mulf %65, %66 : vector<8x8xf32>
    %cst_36 = arith.constant dense<0xFF800000> : vector<8xf32>
    %68 = vector.multi_reduction <maximumf>, %67, %cst_36 [1] : vector<8x8xf32> to vector<8xf32>
    %69 = vector.shape_cast %68 : vector<8xf32> to vector<8x1xf32>
    %70 = vector.broadcast %69 : vector<8x1xf32> to vector<8x8xf32>
    %71 = arith.subf %67, %70 : vector<8x8xf32>
    %72 = math.exp %71 : vector<8x8xf32>
    %cst_37 = arith.constant dense<0.000000e+00> : vector<8xf32>
    %73 = vector.multi_reduction <add>, %72, %cst_37 [1] : vector<8x8xf32> to vector<8xf32>
    %74 = vector.shape_cast %73 : vector<8xf32> to vector<8x1xf32>
    %75 = tpu.reciprocal %74 {approx = true} : vector<8x1xf32> -> vector<8x1xf32>
    %76 = vector.broadcast %75 : vector<8x1xf32> to vector<8x8xf32>
    %77 = arith.mulf %72, %76 : vector<8x8xf32>
    %cst_38 = arith.constant dense<0.000000e+00> : vector<8x8xf32>
    %78 = tpu.matmul %77, %64, %cst_38 {dimension_numbers = #tpu.dot_dimension_numbers<[1], [0], [0], [1], [0, 0, 1, 1], [], []>} : vector<8x8xf32>, vector<8x8xf32>, vector<8x8xf32> -> vector<8x8xf32>
    %79 = vector.extract_strided_slice %20 {offsets = [16, 0], sizes = [8, 32], strides = [1, 1]} : vector<32x32xf32> to vector<8x32xf32>
    %cst_39 = arith.constant dense<0.000000e+00> : vector<8x32xf32>
    %80 = tpu.matmul %78, %79, %cst_39 {dimension_numbers = #tpu.dot_dimension_numbers<[1], [0], [0], [1], [0, 0, 1, 1], [], []>} : vector<8x8xf32>, vector<8x32xf32>, vector<8x32xf32> -> vector<8x32xf32>
    %81 = arith.addf %61, %80 : vector<8x32xf32>
    %82 = vector.extract_strided_slice %19 {offsets = [0, 24], sizes = [8, 8], strides = [1, 1]} : vector<8x96xf32> to vector<8x8xf32>
    %83 = vector.extract_strided_slice %19 {offsets = [0, 56], sizes = [8, 8], strides = [1, 1]} : vector<8x96xf32> to vector<8x8xf32>
    %84 = vector.extract_strided_slice %19 {offsets = [0, 88], sizes = [8, 8], strides = [1, 1]} : vector<8x96xf32> to vector<8x8xf32>
    %cst_40 = arith.constant dense<0.000000e+00> : vector<8x8xf32>
    %85 = tpu.matmul %82, %83, %cst_40 {dimension_numbers = #tpu.dot_dimension_numbers<[1], [1], [0], [0], [0, 0, 1, 0], [], []>} : vector<8x8xf32>, vector<8x8xf32>, vector<8x8xf32> -> vector<8x8xf32>
    %cst_41 = arith.constant 0.353553385 : f32
    %86 = vector.broadcast %cst_41 : f32 to vector<8x8xf32>
    %87 = arith.mulf %85, %86 : vector<8x8xf32>
    %cst_42 = arith.constant dense<0xFF800000> : vector<8xf32>
    %88 = vector.multi_reduction <maximumf>, %87, %cst_42 [1] : vector<8x8xf32> to vector<8xf32>
    %89 = vector.shape_cast %88 : vector<8xf32> to vector<8x1xf32>
    %90 = vector.broadcast %89 : vector<8x1xf32> to vector<8x8xf32>
    %91 = arith.subf %87, %90 : vector<8x8xf32>
    %92 = math.exp %91 : vector<8x8xf32>
    %cst_43 = arith.constant dense<0.000000e+00> : vector<8xf32>
    %93 = vector.multi_reduction <add>, %92, %cst_43 [1] : vector<8x8xf32> to vector<8xf32>
    %94 = vector.shape_cast %93 : vector<8xf32> to vector<8x1xf32>
    %95 = tpu.reciprocal %94 {approx = true} : vector<8x1xf32> -> vector<8x1xf32>
    %96 = vector.broadcast %95 : vector<8x1xf32> to vector<8x8xf32>
    %97 = arith.mulf %92, %96 : vector<8x8xf32>
    %cst_44 = arith.constant dense<0.000000e+00> : vector<8x8xf32>
    %98 = tpu.matmul %97, %84, %cst_44 {dimension_numbers = #tpu.dot_dimension_numbers<[1], [0], [0], [1], [0, 0, 1, 1], [], []>} : vector<8x8xf32>, vector<8x8xf32>, vector<8x8xf32> -> vector<8x8xf32>
    %99 = vector.extract_strided_slice %20 {offsets = [24, 0], sizes = [8, 32], strides = [1, 1]} : vector<32x32xf32> to vector<8x32xf32>
    %cst_45 = arith.constant dense<0.000000e+00> : vector<8x32xf32>
    %100 = tpu.matmul %98, %99, %cst_45 {dimension_numbers = #tpu.dot_dimension_numbers<[1], [0], [0], [1], [0, 0, 1, 1], [], []>} : vector<8x8xf32>, vector<8x32xf32>, vector<8x32xf32> -> vector<8x32xf32>
    %101 = arith.addf %81, %100 : vector<8x32xf32>
    %c0_46 = arith.constant 0 : index
    %c0_47 = arith.constant 0 : index
    %102 = vector.load %arg10[%c0_46, %c0_47] : memref<1x32xf32, #tpu.memory_space<vmem>>, vector<1x32xf32>
    %103 = vector.broadcast %102 : vector<1x32xf32> to vector<8x32xf32>
    %104 = arith.addf %101, %103 : vector<8x32xf32>
    %c0_48 = arith.constant 0 : index
    %c0_49 = arith.constant 0 : index
    %105 = vector.load %arg11[%c0_48, %c0_49] : memref<1x32xf32, #tpu.memory_space<vmem>>, vector<1x32xf32>
    %c0_50 = arith.constant 0 : index
    %c0_51 = arith.constant 0 : index
    %106 = vector.load %arg12[%c0_50, %c0_51] : memref<1x32xf32, #tpu.memory_space<vmem>>, vector<1x32xf32>
    %107 = arith.addf %104, %14 : vector<8x32xf32>
    %cst_52 = arith.constant dense<0.000000e+00> : vector<8xf32>
    %108 = vector.multi_reduction <add>, %107, %cst_52 [1] : vector<8x32xf32> to vector<8xf32>
    %109 = vector.shape_cast %108 : vector<8xf32> to vector<8x1xf32>
    %cst_53 = arith.constant 3.200000e+01 : f32
    %110 = vector.broadcast %cst_53 : f32 to vector<8x1xf32>
    %111 = arith.divf %109, %110 : vector<8x1xf32>
    %112 = vector.broadcast %111 : vector<8x1xf32> to vector<8x32xf32>
    %113 = arith.subf %107, %112 : vector<8x32xf32>
    %114 = arith.mulf %113, %113 : vector<8x32xf32>
    %cst_54 = arith.constant dense<0.000000e+00> : vector<8xf32>
    %115 = vector.multi_reduction <add>, %114, %cst_54 [1] : vector<8x32xf32> to vector<8xf32>
    %116 = vector.shape_cast %115 : vector<8xf32> to vector<8x1xf32>
    %cst_55 = arith.constant 3.200000e+01 : f32
    %117 = vector.broadcast %cst_55 : f32 to vector<8x1xf32>
    %118 = arith.divf %116, %117 : vector<8x1xf32>
    %119 = vector.broadcast %111 : vector<8x1xf32> to vector<8x32xf32>
    %120 = arith.subf %107, %119 : vector<8x32xf32>
    %cst_56 = arith.constant 9.99999974E-6 : f32
    %121 = vector.broadcast %cst_56 : f32 to vector<8x1xf32>
    %122 = arith.addf %118, %121 : vector<8x1xf32>
    %123 = math.rsqrt %122 : vector<8x1xf32>
    %124 = vector.broadcast %123 : vector<8x1xf32> to vector<8x32xf32>
    %125 = arith.mulf %120, %124 : vector<8x32xf32>
    %126 = vector.broadcast %105 : vector<1x32xf32> to vector<8x32xf32>
    %127 = arith.mulf %125, %126 : vector<8x32xf32>
    %128 = vector.broadcast %106 : vector<1x32xf32> to vector<8x32xf32>
    %129 = arith.addf %127, %128 : vector<8x32xf32>
    %c0_57 = arith.constant 0 : index
    %c0_58 = arith.constant 0 : index
    %130 = vector.load %arg13[%c0_57, %c0_58] : memref<32x32xf32, #tpu.memory_space<vmem>>, vector<32x32xf32>
    %cst_59 = arith.constant dense<0.000000e+00> : vector<8x32xf32>
    %131 = tpu.matmul %129, %130, %cst_59 {dimension_numbers = #tpu.dot_dimension_numbers<[1], [0], [0], [1], [0, 0, 1, 1], [], []>} : vector<8x32xf32>, vector<32x32xf32>, vector<8x32xf32> -> vector<8x32xf32>
    %c0_60 = arith.constant 0 : index
    %c0_61 = arith.constant 0 : index
    %132 = vector.load %arg14[%c0_60, %c0_61] : memref<1x32xf32, #tpu.memory_space<vmem>>, vector<1x32xf32>
    %133 = vector.broadcast %132 : vector<1x32xf32> to vector<8x32xf32>
    %134 = arith.addf %131, %133 : vector<8x32xf32>
    %cst_62 = arith.constant 0.000000e+00 : f32
    %135 = vector.broadcast %cst_62 : f32 to vector<8x32xf32>
    %136 = arith.maximumf %134, %135 : vector<8x32xf32>
    %c0_63 = arith.constant 0 : index
    %c0_64 = arith.constant 0 : index
    %137 = vector.load %arg15[%c0_63, %c0_64] : memref<32x32xf32, #tpu.memory_space<vmem>>, vector<32x32xf32>
    %cst_65 = arith.constant dense<0.000000e+00> : vector<8x32xf32>
    %138 = tpu.matmul %136, %137, %cst_65 {dimension_numbers = #tpu.dot_dimension_numbers<[1], [0], [0], [1], [0, 0, 1, 1], [], []>} : vector<8x32xf32>, vector<32x32xf32>, vector<8x32xf32> -> vector<8x32xf32>
    %c0_66 = arith.constant 0 : index
    %c0_67 = arith.constant 0 : index
    %139 = vector.load %arg16[%c0_66, %c0_67] : memref<1x32xf32, #tpu.memory_space<vmem>>, vector<1x32xf32>
    %140 = vector.broadcast %139 : vector<1x32xf32> to vector<8x32xf32>
    %141 = arith.addf %138, %140 : vector<8x32xf32>
    %c0_68 = arith.constant 0 : index
    %c0_69 = arith.constant 0 : index
    %142 = vector.load %arg17[%c0_68, %c0_69] : memref<1x32xf32, #tpu.memory_space<vmem>>, vector<1x32xf32>
    %c0_70 = arith.constant 0 : index
    %c0_71 = arith.constant 0 : index
    %143 = vector.load %arg18[%c0_70, %c0_71] : memref<1x32xf32, #tpu.memory_space<vmem>>, vector<1x32xf32>
    %144 = arith.addf %141, %129 : vector<8x32xf32>
    %cst_72 = arith.constant dense<0.000000e+00> : vector<8xf32>
    %145 = vector.multi_reduction <add>, %144, %cst_72 [1] : vector<8x32xf32> to vector<8xf32>
    %146 = vector.shape_cast %145 : vector<8xf32> to vector<8x1xf32>
    %cst_73 = arith.constant 3.200000e+01 : f32
    %147 = vector.broadcast %cst_73 : f32 to vector<8x1xf32>
    %148 = arith.divf %146, %147 : vector<8x1xf32>
    %149 = vector.broadcast %148 : vector<8x1xf32> to vector<8x32xf32>
    %150 = arith.subf %144, %149 : vector<8x32xf32>
    %151 = arith.mulf %150, %150 : vector<8x32xf32>
    %cst_74 = arith.constant dense<0.000000e+00> : vector<8xf32>
    %152 = vector.multi_reduction <add>, %151, %cst_74 [1] : vector<8x32xf32> to vector<8xf32>
    %153 = vector.shape_cast %152 : vector<8xf32> to vector<8x1xf32>
    %cst_75 = arith.constant 3.200000e+01 : f32
    %154 = vector.broadcast %cst_75 : f32 to vector<8x1xf32>
    %155 = arith.divf %153, %154 : vector<8x1xf32>
    %156 = vector.broadcast %148 : vector<8x1xf32> to vector<8x32xf32>
    %157 = arith.subf %144, %156 : vector<8x32xf32>
    %cst_76 = arith.constant 9.99999974E-6 : f32
    %158 = vector.broadcast %cst_76 : f32 to vector<8x1xf32>
    %159 = arith.addf %155, %158 : vector<8x1xf32>
    %160 = math.rsqrt %159 : vector<8x1xf32>
    %161 = vector.broadcast %160 : vector<8x1xf32> to vector<8x32xf32>
    %162 = arith.mulf %157, %161 : vector<8x32xf32>
    %163 = vector.broadcast %142 : vector<1x32xf32> to vector<8x32xf32>
    %164 = arith.mulf %162, %163 : vector<8x32xf32>
    %165 = vector.broadcast %143 : vector<1x32xf32> to vector<8x32xf32>
    %166 = arith.addf %164, %165 : vector<8x32xf32>
    %c0_77 = arith.constant 0 : index
    %c0_78 = arith.constant 0 : index
    %c0_79 = arith.constant 0 : index
    %167 = vector.load %arg19[%c0_77, %c0_78, %c0_79] : memref<1x8x32xf32, #tpu.memory_space<vmem>>, vector<1x8x32xf32>
    %168 = vector.shape_cast %167 : vector<1x8x32xf32> to vector<8x32xf32>
    %169 = vector.shape_cast %166 : vector<8x32xf32> to vector<1x8x32xf32>
    tpu.vector_store %arg19[%c0_77, %c0_78, %c0_79], %169 {strides = array<i32>} : memref<1x8x32xf32, #tpu.memory_space<vmem>>, vector<1x8x32xf32>,
    return
  }
  func.func @transform_0(%arg0: i32) -> (i32, i32, i32) {
    %c0_i32 = arith.constant 0 : i32
    %c0_i32_0 = arith.constant 0 : i32
    %c0_i32_1 = arith.constant 0 : i32
    return %arg0, %c0_i32, %c0_i32_0 : i32, i32, i32
  }
  func.func @transform_1(%arg0: i32) -> (i32, i32, i32) {
    %c0_i32 = arith.constant 0 : i32
    %c0_i32_0 = arith.constant 0 : i32
    %c0_i32_1 = arith.constant 0 : i32
    %c0_i32_2 = arith.constant 0 : i32
    return %c0_i32, %c0_i32_0, %c0_i32_1 : i32, i32, i32
  }
  func.func @transform_2(%arg0: i32) -> (i32, i32) {
    %c0_i32 = arith.constant 0 : i32
    %c0_i32_0 = arith.constant 0 : i32
    %c0_i32_1 = arith.constant 0 : i32
    return %c0_i32, %c0_i32_0 : i32, i32
  }
  func.func @transform_3(%arg0: i32) -> (i32, i32) {
    %c0_i32 = arith.constant 0 : i32
    %c0_i32_0 = arith.constant 0 : i32
    %c0_i32_1 = arith.constant 0 : i32
    return %c0_i32, %c0_i32_0 : i32, i32
  }
  func.func @transform_4(%arg0: i32) -> (i32, i32) {
    %c0_i32 = arith.constant 0 : i32
    %c0_i32_0 = arith.constant 0 : i32
    %c0_i32_1 = arith.constant 0 : i32
    return %c0_i32, %c0_i32_0 : i32, i32
  }
  func.func @transform_5(%arg0: i32) -> (i32, i32) {
    %c0_i32 = arith.constant 0 : i32
    %c0_i32_0 = arith.constant 0 : i32
    %c0_i32_1 = arith.constant 0 : i32
    return %c0_i32, %c0_i32_0 : i32, i32
  }
  func.func @transform_6(%arg0: i32) -> (i32, i32) {
    %c0_i32 = arith.constant 0 : i32
    %c0_i32_0 = arith.constant 0 : i32
    %c0_i32_1 = arith.constant 0 : i32
    return %c0_i32, %c0_i32_0 : i32, i32
  }
  func.func @transform_7(%arg0: i32) -> (i32, i32) {
    %c0_i32 = arith.constant 0 : i32
    %c0_i32_0 = arith.constant 0 : i32
    %c0_i32_1 = arith.constant 0 : i32
    return %c0_i32, %c0_i32_0 : i32, i32
  }
  func.func @transform_8(%arg0: i32) -> (i32, i32) {
    %c0_i32 = arith.constant 0 : i32
    %c0_i32_0 = arith.constant 0 : i32
    %c0_i32_1 = arith.constant 0 : i32
    return %c0_i32, %c0_i32_0 : i32, i32
  }
  func.func @transform_9(%arg0: i32) -> (i32, i32) {
    %c0_i32 = arith.constant 0 : i32
    %c0_i32_0 = arith.constant 0 : i32
    %c0_i32_1 = arith.constant 0 : i32
    return %c0_i32, %c0_i32_0 : i32, i32
  }
  func.func @transform_10(%arg0: i32) -> (i32, i32) {
    %c0_i32 = arith.constant 0 : i32
    %c0_i32_0 = arith.constant 0 : i32
    %c0_i32_1 = arith.constant 0 : i32
    return %c0_i32, %c0_i32_0 : i32, i32
  }
  func.func @transform_11(%arg0: i32) -> (i32, i32) {
    %c0_i32 = arith.constant 0 : i32
    %c0_i32_0 = arith.constant 0 : i32
    %c0_i32_1 = arith.constant 0 : i32
    return %c0_i32, %c0_i32_0 : i32, i32
  }
  func.func @transform_12(%arg0: i32) -> (i32, i32) {
    %c0_i32 = arith.constant 0 : i32
    %c0_i32_0 = arith.constant 0 : i32
    %c0_i32_1 = arith.constant 0 : i32
    return %c0_i32, %c0_i32_0 : i32, i32
  }
  func.func @transform_13(%arg0: i32) -> (i32, i32) {
    %c0_i32 = arith.constant 0 : i32
    %c0_i32_0 = arith.constant 0 : i32
    %c0_i32_1 = arith.constant 0 : i32
    return %c0_i32, %c0_i32_0 : i32, i32
  }
  func.func @transform_14(%arg0: i32) -> (i32, i32) {
    %c0_i32 = arith.constant 0 : i32
    %c0_i32_0 = arith.constant 0 : i32
    %c0_i32_1 = arith.constant 0 : i32
    return %c0_i32, %c0_i32_0 : i32, i32
  }
  func.func @transform_15(%arg0: i32) -> (i32, i32) {
    %c0_i32 = arith.constant 0 : i32
    %c0_i32_0 = arith.constant 0 : i32
    %c0_i32_1 = arith.constant 0 : i32
    return %c0_i32, %c0_i32_0 : i32, i32
  }
  func.func @transform_16(%arg0: i32) -> (i32, i32) {
    %c0_i32 = arith.constant 0 : i32
    %c0_i32_0 = arith.constant 0 : i32
    %c0_i32_1 = arith.constant 0 : i32
    return %c0_i32, %c0_i32_0 : i32, i32
  }
  func.func @transform_17(%arg0: i32) -> (i32, i32) {
    %c0_i32 = arith.constant 0 : i32
    %c0_i32_0 = arith.constant 0 : i32
    %c0_i32_1 = arith.constant 0 : i32
    return %c0_i32, %c0_i32_0 : i32, i32
  }
  func.func @transform_18(%arg0: i32) -> (i32, i32, i32) {
    %c0_i32 = arith.constant 0 : i32
    %c0_i32_0 = arith.constant 0 : i32
    %c0_i32_1 = arith.constant 0 : i32
    return %arg0, %c0_i32, %c0_i32_0 : i32, i32, i32
  }
}

</mosaic_0001>

<llo_original>
// kernel: tpu_custom_call.1
$region0: #{tpu_custom_call.1}
  #allocation0 [shape = 'u32[]', space=smem, size = 0x4, offset = 0x4, fixed_abs, tag = 'smem constant byte address 0x4 - core index']
  #allocation1 [shape = 'u32[144,128]{1,0:T(1,128)}', space=vmem, size = 0x12000, scoped, tag = 'internal scratch']
  %s0 = inlined_call_operand.hbm [shape: f32[2,8,16], index: 0, kind: input, shape index: {}]
  %s1 = inlined_call_operand.hbm [shape: f32[1,8,16], index: 1, kind: input, shape index: {}]
  %s2 = inlined_call_operand.hbm [shape: f32[16,16], index: 2, kind: input, shape index: {}]
  %s3 = inlined_call_operand.vmem [shape: f32[1,16], index: 3, kind: input, shape index: {}]
  %s4 = inlined_call_operand.hbm [shape: f32[16,32], index: 4, kind: input, shape index: {}]
  %s5 = inlined_call_operand.vmem [shape: f32[1,32], index: 5, kind: input, shape index: {}]
  %s6 = inlined_call_operand.hbm [shape: f32[32,96], index: 6, kind: input, shape index: {}]
  %s7 = inlined_call_operand.vmem [shape: f32[1,96], index: 7, kind: input, shape index: {}]
  %s8 = inlined_call_operand.hbm [shape: f32[32,32], index: 8, kind: input, shape index: {}]
  %s9 = inlined_call_operand.vmem [shape: f32[1,32], index: 9, kind: input, shape index: {}]
  %s10 = inlined_call_operand.vmem [shape: f32[1,32], index: 10, kind: input, shape index: {}]
  %s11 = inlined_call_operand.vmem [shape: f32[1,32], index: 11, kind: input, shape index: {}]
  %s12 = inlined_call_operand.vmem [shape: f32[32,32], index: 12, kind: input, shape index: {}]
  %s13 = inlined_call_operand.vmem [shape: f32[1,32], index: 13, kind: input, shape index: {}]
  %s14 = inlined_call_operand.hbm [shape: f32[32,32], index: 14, kind: input, shape index: {}]
  %s15 = inlined_call_operand.vmem [shape: f32[1,32], index: 15, kind: input, shape index: {}]
  %s16 = inlined_call_operand.vmem [shape: f32[1,32], index: 16, kind: input, shape index: {}]
  %s17 = inlined_call_operand.vmem [shape: f32[1,32], index: 17, kind: input, shape index: {}]
  %s18 = inlined_call_operand.hbm [shape: f32[2,8,32], index: 18, kind: output, shape index: {}]
  %s19 = sld [smem:[#allocation0]]
  $region133: #{tpu_custom_call.1} parent=0
    _
  %s21 = ssub.s32 1, %s19
  %s22 = scalar_select 0, %s21, %s19
  $region1: #{tpu_custom_call.1} parent=0
    #allocation2 [shape = 'u8[8192]{0}', space=vmem, size = 0x2000, scoped, tag = 'input window, operand 0']
    #allocation3 [shape = 's32[2]{0}', space=sflag, size = 0x8, scoped, tag = 'scoped memory for tpu_custom_call.1']
    #allocation4 [shape = 's32[2]{0}', space=sflag, size = 0x8, scoped, tag = 'scoped memory for tpu_custom_call.1']
    #allocation5 [shape = 'u8[4096]{0}', space=vmem, size = 0x1000, scoped, tag = 'input window, operand 1, single buffered']
    #allocation6 [shape = 's32[1]{0}', space=sflag, size = 0x4, scoped, tag = 'scoped memory for tpu_custom_call.1']
    #allocation7 [shape = 'u8[8192]{0}', space=vmem, size = 0x2000, scoped, tag = 'input window, operand 2, single buffered']
    #allocation8 [shape = 'u8[8192]{0}', space=vmem, size = 0x2000, scoped, tag = 'input window, operand 4, single buffered']
    #allocation9 [shape = 's32[1]{0}', space=sflag, size = 0x4, scoped, tag = 'scoped memory for tpu_custom_call.1']
    #allocation10 [shape = 'u8[16384]{0}', space=vmem, size = 0x4000, scoped, tag = 'input window, operand 6, single buffered']
    #allocation11 [shape = 'u8[16384]{0}', space=vmem, size = 0x4000, scoped, tag = 'input window, operand 8, single buffered']
    #allocation12 [shape = 's32[1]{0}', space=sflag, size = 0x4, scoped, tag = 'scoped memory for tpu_custom_call.1']
    #allocation13 [shape = 'u8[16384]{0}', space=vmem, size = 0x4000, scoped, tag = 'input window, operand 14, single buffered']
    #allocation14 [shape = 'u8[8192]{0}', space=vmem, size = 0x2000, scoped, tag = 'output window, operand 0']
    %23 = vsyncpa [#allocation3], 0
    %s24 = scalar_lea.sflag [#allocation3], 1
    %25 = vsyncpa %s24, 0
    %26 = vsyncpa [#allocation6], 0
    %27 = vsyncpa [#allocation9], 0
    %28 = vsyncpa [#allocation12], 0
    %29 = vsyncpa [#allocation4], 0
    %s30 = scalar_lea.sflag [#allocation4], 1
    %31 = vsyncpa %s30, 0
    loop: start=0, step=1, limit=4
    $region2: #{tpu_custom_call.1} parent=1 // loop_pre_header
      _
    $region3: #{tpu_custom_call.1} parent=1 // loop_header
      %s33 = sphi 0, %s37
      %p34 = scmp.ge.s32.totalorder %s33, 4
      %s43 = sphi 0, %s45
      %s46 = sphi 0, %s43
      %s47 = sphi 0, %s46
      %s63 = sphi 0, %s47
      %s67 = sphi 0, %s67
      %s69 = sphi 0, %s67
      %s70 = sphi 0, %s69
      %s84 = sphi 0, %s70
      %s88 = sphi 0, %s88
      %s90 = sphi 0, %s88
      %s91 = sphi 0, %s90
      %s105 = sphi 0, %s91
      %s109 = sphi 0, %s109
      %s111 = sphi 0, %s109
      %s112 = sphi 0, %s111
      %s126 = sphi 0, %s112
      %s130 = sphi 0, %s130
      %s132 = sphi 0, %s130
      %s133 = sphi 0, %s132
      %s147 = sphi 0, %s133
      %s151 = sphi 0, %s151
      %s153 = sphi 0, %s151
      %s154 = sphi 0, %s153
      %s168 = sphi 0, %s154
      %s172 = sphi 0, %s172
      %s174 = sphi 0, %s172
      %s175 = sphi 0, %s174
      %s189 = sphi 0, %s175
      %s193 = sphi 0, %s193
      %s195 = sphi 0, %s193
      %s196 = sphi 0, %s195
      %s210 = sphi 0, %s196
      %s214 = sphi 0, %s214
      %s216 = sphi 0, %s214
      %s217 = sphi 0, %s216
      %s231 = sphi 0, %s217
      %s235 = sphi 0, %s235
      %s237 = sphi 0, %s235
      %s238 = sphi 0, %s237
      %s252 = sphi 0, %s238
      %s256 = sphi 0, %s256
      %s258 = sphi 0, %s256
      %s259 = sphi 0, %s258
      %s273 = sphi 0, %s259
      %s277 = sphi 0, %s277
      %s279 = sphi 0, %s277
      %s280 = sphi 0, %s279
      %s294 = sphi 0, %s280
      %s298 = sphi 0, %s298
      %s300 = sphi 0, %s298
      %s301 = sphi 0, %s300
      %s315 = sphi 0, %s301
      %s319 = sphi 0, %s319
      %s321 = sphi 0, %s319
      %s322 = sphi 0, %s321
      %s336 = sphi 0, %s322
      %s340 = sphi 0, %s340
      %s342 = sphi 0, %s340
      %s343 = sphi 0, %s342
      %s357 = sphi 0, %s343
      %s361 = sphi 0, %s361
      %s363 = sphi 0, %s361
      %s364 = sphi 0, %s363
      %s378 = sphi 0, %s364
      %s382 = sphi 0, %s382
      %s384 = sphi 0, %s382
      %s385 = sphi 0, %s384
      %s399 = sphi 0, %s385
      %s403 = sphi 0, %s403
      %s405 = sphi 0, %s403
      %s406 = sphi 0, %s405
      %s420 = sphi 0, %s406
      %s426 = sphi 0, %s428
      %s429 = sphi 0, %s426
      %s430 = sphi 0, %s429
      %s446 = sphi 0, %s430
    $region4: #{tpu_custom_call.1} parent=1 // loop_header_branch
      %36 = sbr.rel (%p34) target = $region8
    $region5: #{tpu_custom_call.1} parent=1 // loop_body
      %s38 = ssub.s32 %s33, 1
      %s39 = ssub.s32 %s33, 2
      %s40 = sadd.s32 %s33, 1
      %s41 = ssub.s32 %s33, %s40
      %p42 = scmp.eq.s32.totalorder %s41, 0
      %s44 = sadd.s32 %s43, 1
      %s45 = scalar_select %p42, %s43, %s44
      %p48 = pneg %p42
      %p49 = scmp.eq.s32.totalorder %s33, 1
      %p50 = por %p48, %p49
      %p51 = scmp.ne.s32.totalorder %s43, %s46
      %p52 = scmp.eq.s32.totalorder %s33, 0
      %p53 = por %p51, %p52
      %p54 = scmp.ne.s32.totalorder %s43, %s46
      %p55 = scmp.eq.s32.totalorder %s38, 1
      %p56 = por %p54, %p55
      %p57 = scmp.ne.s32.totalorder %s46, %s47
      %p58 = scmp.eq.s32.totalorder %s38, 0
      %p59 = por %p57, %p58
      %p60 = scmp.ne.s32.totalorder %s46, %s47
      %p61 = scmp.eq.s32.totalorder %s39, 1
      %p62 = por %p60, %p61
      %p64 = scmp.ne.s32.totalorder %s47, %s63
      %p65 = scmp.eq.s32.totalorder %s39, 0
      %p66 = por %p64, %p65
      %s68 = sadd.s32 %s67, 1
      %p71 = scmp.eq.s32.totalorder %s33, 1
      %p72 = scmp.ne.s32.totalorder %s67, %s69
      %p73 = scmp.eq.s32.totalorder %s33, 0
      %p74 = por %p72, %p73
      %p75 = scmp.ne.s32.totalorder %s67, %s69
      %p76 = scmp.eq.s32.totalorder %s38, 1
      %p77 = por %p75, %p76
      %p78 = scmp.ne.s32.totalorder %s69, %s70
      %p79 = scmp.eq.s32.totalorder %s38, 0
      %p80 = por %p78, %p79
      %p81 = scmp.ne.s32.totalorder %s69, %s70
      %p82 = scmp.eq.s32.totalorder %s39, 1
      %p83 = por %p81, %p82
      %p85 = scmp.ne.s32.totalorder %s70, %s84
      %p86 = scmp.eq.s32.totalorder %s39, 0
      %p87 = por %p85, %p86
      %s89 = sadd.s32 %s88, 1
      %p92 = scmp.eq.s32.totalorder %s33, 1
      %p93 = scmp.ne.s32.totalorder %s88, %s90
      %p94 = scmp.eq.s32.totalorder %s33, 0
      %p95 = por %p93, %p94
      %p96 = scmp.ne.s32.totalorder %s88, %s90
      %p97 = scmp.eq.s32.totalorder %s38, 1
      %p98 = por %p96, %p97
      %p99 = scmp.ne.s32.totalorder %s90, %s91
      %p100 = scmp.eq.s32.totalorder %s38, 0
      %p101 = por %p99, %p100
      %p102 = scmp.ne.s32.totalorder %s90, %s91
      %p103 = scmp.eq.s32.totalorder %s39, 1
      %p104 = por %p102, %p103
      %p106 = scmp.ne.s32.totalorder %s91, %s105
      %p107 = scmp.eq.s32.totalorder %s39, 0
      %p108 = por %p106, %p107
      %s110 = sadd.s32 %s109, 1
      %p113 = scmp.eq.s32.totalorder %s33, 1
      %p114 = scmp.ne.s32.totalorder %s109, %s111
      %p115 = scmp.eq.s32.totalorder %s33, 0
      %p116 = por %p114, %p115
      %p117 = scmp.ne.s32.totalorder %s109, %s111
      %p118 = scmp.eq.s32.totalorder %s38, 1
      %p119 = por %p117, %p118
      %p120 = scmp.ne.s32.totalorder %s111, %s112
      %p121 = scmp.eq.s32.totalorder %s38, 0
      %p122 = por %p120, %p121
      %p123 = scmp.ne.s32.totalorder %s111, %s112
      %p124 = scmp.eq.s32.totalorder %s39, 1
      %p125 = por %p123, %p124
      %p127 = scmp.ne.s32.totalorder %s112, %s126
      %p128 = scmp.eq.s32.totalorder %s39, 0
      %p129 = por %p127, %p128
      %s131 = sadd.s32 %s130, 1
      %p134 = scmp.eq.s32.totalorder %s33, 1
      %p135 = scmp.ne.s32.totalorder %s130, %s132
      %p136 = scmp.eq.s32.totalorder %s33, 0
      %p137 = por %p135, %p136
      %p138 = scmp.ne.s32.totalorder %s130, %s132
      %p139 = scmp.eq.s32.totalorder %s38, 1
      %p140 = por %p138, %p139
      %p141 = scmp.ne.s32.totalorder %s132, %s133
      %p142 = scmp.eq.s32.totalorder %s38, 0
      %p143 = por %p141, %p142
      %p144 = scmp.ne.s32.totalorder %s132, %s133
      %p145 = scmp.eq.s32.totalorder %s39, 1
      %p146 = por %p144, %p145
      %p148 = scmp.ne.s32.totalorder %s133, %s147
      %p149 = scmp.eq.s32.totalorder %s39, 0
      %p150 = por %p148, %p149
      %s152 = sadd.s32 %s151, 1
      %p155 = scmp.eq.s32.totalorder %s33, 1
      %p156 = scmp.ne.s32.totalorder %s151, %s153
      %p157 = scmp.eq.s32.totalorder %s33, 0
      %p158 = por %p156, %p157
      %p159 = scmp.ne.s32.totalorder %s151, %s153
      %p160 = scmp.eq.s32.totalorder %s38, 1
      %p161 = por %p159, %p160
      %p162 = scmp.ne.s32.totalorder %s153, %s154
      %p163 = scmp.eq.s32.totalorder %s38, 0
      %p164 = por %p162, %p163
      %p165 = scmp.ne.s32.totalorder %s153, %s154
      %p166 = scmp.eq.s32.totalorder %s39, 1
      %p167 = por %p165, %p166
      %p169 = scmp.ne.s32.totalorder %s154, %s168
      %p170 = scmp.eq.s32.totalorder %s39, 0
      %p171 = por %p169, %p170
      %s173 = sadd.s32 %s172, 1
      %p176 = scmp.eq.s32.totalorder %s33, 1
      %p177 = scmp.ne.s32.totalorder %s172, %s174
      %p178 = scmp.eq.s32.totalorder %s33, 0
      %p179 = por %p177, %p178
      %p180 = scmp.ne.s32.totalorder %s172, %s174
      %p181 = scmp.eq.s32.totalorder %s38, 1
      %p182 = por %p180, %p181
      %p183 = scmp.ne.s32.totalorder %s174, %s175
      %p184 = scmp.eq.s32.totalorder %s38, 0
      %p185 = por %p183, %p184
      %p186 = scmp.ne.s32.totalorder %s174, %s175
      %p187 = scmp.eq.s32.totalorder %s39, 1
      %p188 = por %p186, %p187
      %p190 = scmp.ne.s32.totalorder %s175, %s189
      %p191 = scmp.eq.s32.totalorder %s39, 0
      %p192 = por %p190, %p191
      %s194 = sadd.s32 %s193, 1
      %p197 = scmp.eq.s32.totalorder %s33, 1
      %p198 = scmp.ne.s32.totalorder %s193, %s195
      %p199 = scmp.eq.s32.totalorder %s33, 0
      %p200 = por %p198, %p199
      %p201 = scmp.ne.s32.totalorder %s193, %s195
      %p202 = scmp.eq.s32.totalorder %s38, 1
      %p203 = por %p201, %p202
      %p204 = scmp.ne.s32.totalorder %s195, %s196
      %p205 = scmp.eq.s32.totalorder %s38, 0
      %p206 = por %p204, %p205
      %p207 = scmp.ne.s32.totalorder %s195, %s196
      %p208 = scmp.eq.s32.totalorder %s39, 1
      %p209 = por %p207, %p208
      %p211 = scmp.ne.s32.totalorder %s196, %s210
      %p212 = scmp.eq.s32.totalorder %s39, 0
      %p213 = por %p211, %p212
      %s215 = sadd.s32 %s214, 1
      %p218 = scmp.eq.s32.totalorder %s33, 1
      %p219 = scmp.ne.s32.totalorder %s214, %s216
      %p220 = scmp.eq.s32.totalorder %s33, 0
      %p221 = por %p219, %p220
      %p222 = scmp.ne.s32.totalorder %s214, %s216
      %p223 = scmp.eq.s32.totalorder %s38, 1
      %p224 = por %p222, %p223
      %p225 = scmp.ne.s32.totalorder %s216, %s217
      %p226 = scmp.eq.s32.totalorder %s38, 0
      %p227 = por %p225, %p226
      %p228 = scmp.ne.s32.totalorder %s216, %s217
      %p229 = scmp.eq.s32.totalorder %s39, 1
      %p230 = por %p228, %p229
      %p232 = scmp.ne.s32.totalorder %s217, %s231
      %p233 = scmp.eq.s32.totalorder %s39, 0
      %p234 = por %p232, %p233
      %s236 = sadd.s32 %s235, 1
      %p239 = scmp.eq.s32.totalorder %s33, 1
      %p240 = scmp.ne.s32.totalorder %s235, %s237
      %p241 = scmp.eq.s32.totalorder %s33, 0
      %p242 = por %p240, %p241
      %p243 = scmp.ne.s32.totalorder %s235, %s237
      %p244 = scmp.eq.s32.totalorder %s38, 1
      %p245 = por %p243, %p244
      %p246 = scmp.ne.s32.totalorder %s237, %s238
      %p247 = scmp.eq.s32.totalorder %s38, 0
      %p248 = por %p246, %p247
      %p249 = scmp.ne.s32.totalorder %s237, %s238
      %p250 = scmp.eq.s32.totalorder %s39, 1
      %p251 = por %p249, %p250
      %p253 = scmp.ne.s32.totalorder %s238, %s252
      %p254 = scmp.eq.s32.totalorder %s39, 0
      %p255 = por %p253, %p254
      %s257 = sadd.s32 %s256, 1
      %p260 = scmp.eq.s32.totalorder %s33, 1
      %p261 = scmp.ne.s32.totalorder %s256, %s258
      %p262 = scmp.eq.s32.totalorder %s33, 0
      %p263 = por %p261, %p262
      %p264 = scmp.ne.s32.totalorder %s256, %s258
      %p265 = scmp.eq.s32.totalorder %s38, 1
      %p266 = por %p264, %p265
      %p267 = scmp.ne.s32.totalorder %s258, %s259
      %p268 = scmp.eq.s32.totalorder %s38, 0
      %p269 = por %p267, %p268
      %p270 = scmp.ne.s32.totalorder %s258, %s259
      %p271 = scmp.eq.s32.totalorder %s39, 1
      %p272 = por %p270, %p271
      %p274 = scmp.ne.s32.totalorder %s259, %s273
      %p275 = scmp.eq.s32.totalorder %s39, 0
      %p276 = por %p274, %p275
      %s278 = sadd.s32 %s277, 1
      %p281 = scmp.eq.s32.totalorder %s33, 1
      %p282 = scmp.ne.s32.totalorder %s277, %s279
      %p283 = scmp.eq.s32.totalorder %s33, 0
      %p284 = por %p282, %p283
      %p285 = scmp.ne.s32.totalorder %s277, %s279
      %p286 = scmp.eq.s32.totalorder %s38, 1
      %p287 = por %p285, %p286
      %p288 = scmp.ne.s32.totalorder %s279, %s280
      %p289 = scmp.eq.s32.totalorder %s38, 0
      %p290 = por %p288, %p289
      %p291 = scmp.ne.s32.totalorder %s279, %s280
      %p292 = scmp.eq.s32.totalorder %s39, 1
      %p293 = por %p291, %p292
      %p295 = scmp.ne.s32.totalorder %s280, %s294
      %p296 = scmp.eq.s32.totalorder %s39, 0
      %p297 = por %p295, %p296
      %s299 = sadd.s32 %s298, 1
      %p302 = scmp.eq.s32.totalorder %s33, 1
      %p303 = scmp.ne.s32.totalorder %s298, %s300
      %p304 = scmp.eq.s32.totalorder %s33, 0
      %p305 = por %p303, %p304
      %p306 = scmp.ne.s32.totalorder %s298, %s300
      %p307 = scmp.eq.s32.totalorder %s38, 1
      %p308 = por %p306, %p307
      %p309 = scmp.ne.s32.totalorder %s300, %s301
      %p310 = scmp.eq.s32.totalorder %s38, 0
      %p311 = por %p309, %p310
      %p312 = scmp.ne.s32.totalorder %s300, %s301
      %p313 = scmp.eq.s32.totalorder %s39, 1
      %p314 = por %p312, %p313
      %p316 = scmp.ne.s32.totalorder %s301, %s315
      %p317 = scmp.eq.s32.totalorder %s39, 0
      %p318 = por %p316, %p317
      %s320 = sadd.s32 %s319, 1
      %p323 = scmp.eq.s32.totalorder %s33, 1
      %p324 = scmp.ne.s32.totalorder %s319, %s321
      %p325 = scmp.eq.s32.totalorder %s33, 0
      %p326 = por %p324, %p325
      %p327 = scmp.ne.s32.totalorder %s319, %s321
      %p328 = scmp.eq.s32.totalorder %s38, 1
      %p329 = por %p327, %p328
      %p330 = scmp.ne.s32.totalorder %s321, %s322
      %p331 = scmp.eq.s32.totalorder %s38, 0
      %p332 = por %p330, %p331
      %p333 = scmp.ne.s32.totalorder %s321, %s322
      %p334 = scmp.eq.s32.totalorder %s39, 1
      %p335 = por %p333, %p334
      %p337 = scmp.ne.s32.totalorder %s322, %s336
      %p338 = scmp.eq.s32.totalorder %s39, 0
      %p339 = por %p337, %p338
      %s341 = sadd.s32 %s340, 1
      %p344 = scmp.eq.s32.totalorder %s33, 1
      %p345 = scmp.ne.s32.totalorder %s340, %s342
      %p346 = scmp.eq.s32.totalorder %s33, 0
      %p347 = por %p345, %p346
      %p348 = scmp.ne.s32.totalorder %s340, %s342
      %p349 = scmp.eq.s32.totalorder %s38, 1
      %p350 = por %p348, %p349
      %p351 = scmp.ne.s32.totalorder %s342, %s343
      %p352 = scmp.eq.s32.totalorder %s38, 0
      %p353 = por %p351, %p352
      %p354 = scmp.ne.s32.totalorder %s342, %s343
      %p355 = scmp.eq.s32.totalorder %s39, 1
      %p356 = por %p354, %p355
      %p358 = scmp.ne.s32.totalorder %s343, %s357
      %p359 = scmp.eq.s32.totalorder %s39, 0
      %p360 = por %p358, %p359
      %s362 = sadd.s32 %s361, 1
      %p365 = scmp.eq.s32.totalorder %s33, 1
      %p366 = scmp.ne.s32.totalorder %s361, %s363
      %p367 = scmp.eq.s32.totalorder %s33, 0
      %p368 = por %p366, %p367
      %p369 = scmp.ne.s32.totalorder %s361, %s363
      %p370 = scmp.eq.s32.totalorder %s38, 1
      %p371 = por %p369, %p370
      %p372 = scmp.ne.s32.totalorder %s363, %s364
      %p373 = scmp.eq.s32.totalorder %s38, 0
      %p374 = por %p372, %p373
      %p375 = scmp.ne.s32.totalorder %s363, %s364
      %p376 = scmp.eq.s32.totalorder %s39, 1
      %p377 = por %p375, %p376
      %p379 = scmp.ne.s32.totalorder %s364, %s378
      %p380 = scmp.eq.s32.totalorder %s39, 0
      %p381 = por %p379, %p380
      %s383 = sadd.s32 %s382, 1
      %p386 = scmp.eq.s32.totalorder %s33, 1
      %p387 = scmp.ne.s32.totalorder %s382, %s384
      %p388 = scmp.eq.s32.totalorder %s33, 0
      %p389 = por %p387, %p388
      %p390 = scmp.ne.s32.totalorder %s382, %s384
      %p391 = scmp.eq.s32.totalorder %s38, 1
      %p392 = por %p390, %p391
      %p393 = scmp.ne.s32.totalorder %s384, %s385
      %p394 = scmp.eq.s32.totalorder %s38, 0
      %p395 = por %p393, %p394
      %p396 = scmp.ne.s32.totalorder %s384, %s385
      %p397 = scmp.eq.s32.totalorder %s39, 1
      %p398 = por %p396, %p397
      %p400 = scmp.ne.s32.totalorder %s385, %s399
      %p401 = scmp.eq.s32.totalorder %s39, 0
      %p402 = por %p400, %p401
      %s404 = sadd.s32 %s403, 1
      %p407 = scmp.eq.s32.totalorder %s33, 1
      %p408 = scmp.ne.s32.totalorder %s403, %s405
      %p409 = scmp.eq.s32.totalorder %s33, 0
      %p410 = por %p408, %p409
      %p411 = scmp.ne.s32.totalorder %s403, %s405
      %p412 = scmp.eq.s32.totalorder %s38, 1
      %p413 = por %p411, %p412
      %p414 = scmp.ne.s32.totalorder %s405, %s406
      %p415 = scmp.eq.s32.totalorder %s38, 0
      %p416 = por %p414, %p415
      %p417 = scmp.ne.s32.totalorder %s405, %s406
      %p418 = scmp.eq.s32.totalorder %s39, 1
      %p419 = por %p417, %p418
      %p421 = scmp.ne.s32.totalorder %s406, %s420
      %p422 = scmp.eq.s32.totalorder %s39, 0
      %p423 = por %p421, %p422
      %s424 = ssub.s32 %s33, %s40
      %p425 = scmp.eq.s32.totalorder %s424, 0
      %s427 = sadd.s32 %s426, 1
      %s428 = scalar_select %p425, %s426, %s427
      %p431 = pneg %p425
      %p432 = scmp.eq.s32.totalorder %s33, 1
      %p433 = por %p431, %p432
      %p434 = scmp.ne.s32.totalorder %s426, %s429
      %p435 = scmp.eq.s32.totalorder %s33, 0
      %p436 = por %p434, %p435
      %p437 = scmp.ne.s32.totalorder %s426, %s429
      %p438 = scmp.eq.s32.totalorder %s38, 1
      %p439 = por %p437, %p438
      %p440 = scmp.ne.s32.totalorder %s429, %s430
      %p441 = scmp.eq.s32.totalorder %s38, 0
      %p442 = por %p440, %p441
      %p443 = scmp.ne.s32.totalorder %s429, %s430
      %p444 = scmp.eq.s32.totalorder %s39, 1
      %p445 = por %p443, %p444
      %p447 = scmp.ne.s32.totalorder %s430, %s446
      %p448 = scmp.eq.s32.totalorder %s39, 0
      %p449 = por %p447, %p448
      %p450 = scmp.le.s32.totalorder 1, %s33
      %p451 = scmp.lt.s32.totalorder %s33, 3
      %p452 = pnand %p450, %p451
      %p453 = pneg %p452
      // Predicated region
      $region9: #{tpu_custom_call.1} parent=5 // pred_check
        _
      $region10: #{tpu_custom_call.1} parent=5 // pred_check_branch
        %455 = sbr.rel (%p452) target = $region12
      $region11: #{tpu_custom_call.1} parent=5 // pred_region
        %s456 = ssub.s32 %s33, 1
        // Predicated region
        $region13: #{tpu_custom_call.1} parent=11 // pred_check
          %p457 = pneg %p80
        $region14: #{tpu_custom_call.1} parent=11 // pred_check_branch
          %459 = sbr.rel (%p457) target = $region16
        $region15: #{tpu_custom_call.1} parent=11 // pred_region
          %s461 = ssub.s32 128, 128
          %462 = vsyncadd [#allocation6], %s461
          %s464 = sshll.u32 [#allocation5], 4
          %s465 = int_to_ptr.vmem [resolvable:$true] %s464
          %467 = dma.hbm_to_vmem [thread:$0]  %s1, 128, %s465, [#allocation6]
        $region16: #{tpu_custom_call.1} parent=11 // pred_fallthru
          _
        // Predicated region
        $region17: #{tpu_custom_call.1} parent=11 // pred_check
          %p468 = pneg %p101
        $region18: #{tpu_custom_call.1} parent=11 // pred_check_branch
          %470 = sbr.rel (%p468) target = $region20
        $region19: #{tpu_custom_call.1} parent=11 // pred_region
          %s472 = ssub.s32 256, 256
          %473 = vsyncadd [#allocation6], %s472
          %s474 = sshll.u32 [#allocation7], 4
          %s475 = int_to_ptr.vmem [resolvable:$true] %s474
          %480 = dma.hbm_to_vmem [thread:$0]  %s2, 256, %s475, [#allocation6], 128, 128, 8
        $region20: #{tpu_custom_call.1} parent=11 // pred_fallthru
          _
        // Predicated region
        $region21: #{tpu_custom_call.1} parent=11 // pred_check
          %p481 = pneg %p122
        $region22: #{tpu_custom_call.1} parent=11 // pred_check_branch
          %483 = sbr.rel (%p481) target = $region24
        $region23: #{tpu_custom_call.1} parent=11 // pred_region
          _
        $region24: #{tpu_custom_call.1} parent=11 // pred_fallthru
          _
        // Predicated region
        $region25: #{tpu_custom_call.1} parent=11 // pred_check
          %p484 = pneg %p143
        $region26: #{tpu_custom_call.1} parent=11 // pred_check_branch
          %486 = sbr.rel (%p484) target = $region28
        $region27: #{tpu_custom_call.1} parent=11 // pred_region
          %s488 = ssub.s32 256, 256
          %489 = vsyncadd [#allocation9], %s488
          %s490 = sshll.u32 [#allocation8], 4
          %s491 = int_to_ptr.vmem [resolvable:$true] %s490
          %496 = dma.hbm_to_vmem [thread:$0]  %s4, 256, %s491, [#allocation9], 128, 128, 8
        $region28: #{tpu_custom_call.1} parent=11 // pred_fallthru
          _
        // Predicated region
        $region29: #{tpu_custom_call.1} parent=11 // pred_check
          %p497 = pneg %p164
        $region30: #{tpu_custom_call.1} parent=11 // pred_check_branch
          %499 = sbr.rel (%p497) target = $region32
        $region31: #{tpu_custom_call.1} parent=11 // pred_region
          _
        $region32: #{tpu_custom_call.1} parent=11 // pred_fallthru
          _
        // Predicated region
        $region33: #{tpu_custom_call.1} parent=11 // pred_check
          %p500 = pneg %p185
        $region34: #{tpu_custom_call.1} parent=11 // pred_check_branch
          %502 = sbr.rel (%p500) target = $region36
        $region35: #{tpu_custom_call.1} parent=11 // pred_region
          %s504 = ssub.s32 512, 512
          %505 = vsyncadd [#allocation9], %s504
          %s506 = sshll.u32 [#allocation10], 4
          %s507 = int_to_ptr.vmem [resolvable:$true] %s506
          %512 = dma.hbm_to_vmem [thread:$0]  %s6, 512, %s507, [#allocation9], 128, 128, 8
        $region36: #{tpu_custom_call.1} parent=11 // pred_fallthru
          _
        // Predicated region
        $region37: #{tpu_custom_call.1} parent=11 // pred_check
          %p513 = pneg %p206
        $region38: #{tpu_custom_call.1} parent=11 // pred_check_branch
          %515 = sbr.rel (%p513) target = $region40
        $region39: #{tpu_custom_call.1} parent=11 // pred_region
          _
        $region40: #{tpu_custom_call.1} parent=11 // pred_fallthru
          _
        // Predicated region
        $region41: #{tpu_custom_call.1} parent=11 // pred_check
          %p516 = pneg %p227
        $region42: #{tpu_custom_call.1} parent=11 // pred_check_branch
          %518 = sbr.rel (%p516) target = $region44
        $region43: #{tpu_custom_call.1} parent=11 // pred_region
          %s520 = ssub.s32 512, 512
          %521 = vsyncadd [#allocation12], %s520
          %s522 = sshll.u32 [#allocation11], 4
          %s523 = int_to_ptr.vmem [resolvable:$true] %s522
          %528 = dma.hbm_to_vmem [thread:$0]  %s8, 512, %s523, [#allocation12], 128, 128, 8
        $region44: #{tpu_custom_call.1} parent=11 // pred_fallthru
          _
        // Predicated region
        $region45: #{tpu_custom_call.1} parent=11 // pred_check
          %p529 = pneg %p248
        $region46: #{tpu_custom_call.1} parent=11 // pred_check_branch
          %531 = sbr.rel (%p529) target = $region48
        $region47: #{tpu_custom_call.1} parent=11 // pred_region
          _
        $region48: #{tpu_custom_call.1} parent=11 // pred_fallthru
          _
        // Predicated region
        $region49: #{tpu_custom_call.1} parent=11 // pred_check
          %p532 = pneg %p269
        $region50: #{tpu_custom_call.1} parent=11 // pred_check_branch
          %534 = sbr.rel (%p532) target = $region52
        $region51: #{tpu_custom_call.1} parent=11 // pred_region
          _
        $region52: #{tpu_custom_call.1} parent=11 // pred_fallthru
          _
        // Predicated region
        $region53: #{tpu_custom_call.1} parent=11 // pred_check
          %p535 = pneg %p290
        $region54: #{tpu_custom_call.1} parent=11 // pred_check_branch
          %537 = sbr.rel (%p535) target = $region56
        $region55: #{tpu_custom_call.1} parent=11 // pred_region
          _
        $region56: #{tpu_custom_call.1} parent=11 // pred_fallthru
          _
        // Predicated region
        $region57: #{tpu_custom_call.1} parent=11 // pred_check
          %p538 = pneg %p311
        $region58: #{tpu_custom_call.1} parent=11 // pred_check_branch
          %540 = sbr.rel (%p538) target = $region60
        $region59: #{tpu_custom_call.1} parent=11 // pred_region
          _
        $region60: #{tpu_custom_call.1} parent=11 // pred_fallthru
          _
        // Predicated region
        $region61: #{tpu_custom_call.1} parent=11 // pred_check
          %p541 = pneg %p332
        $region62: #{tpu_custom_call.1} parent=11 // pred_check_branch
          %543 = sbr.rel (%p541) target = $region64
        $region63: #{tpu_custom_call.1} parent=11 // pred_region
          _
        $region64: #{tpu_custom_call.1} parent=11 // pred_fallthru
          _
        // Predicated region
        $region65: #{tpu_custom_call.1} parent=11 // pred_check
          %p544 = pneg %p353
        $region66: #{tpu_custom_call.1} parent=11 // pred_check_branch
          %546 = sbr.rel (%p544) target = $region68
        $region67: #{tpu_custom_call.1} parent=11 // pred_region
          %s548 = ssub.s32 512, 512
          %549 = vsyncadd [#allocation12], %s548
          %s550 = sshll.u32 [#allocation13], 4
          %s551 = int_to_ptr.vmem [resolvable:$true] %s550
          %556 = dma.hbm_to_vmem [thread:$0]  %s14, 512, %s551, [#allocation12], 128, 128, 8
        $region68: #{tpu_custom_call.1} parent=11 // pred_fallthru
          _
        // Predicated region
        $region69: #{tpu_custom_call.1} parent=11 // pred_check
          %p557 = pneg %p374
        $region70: #{tpu_custom_call.1} parent=11 // pred_check_branch
          %559 = sbr.rel (%p557) target = $region72
        $region71: #{tpu_custom_call.1} parent=11 // pred_region
          _
        $region72: #{tpu_custom_call.1} parent=11 // pred_fallthru
          _
        // Predicated region
        $region73: #{tpu_custom_call.1} parent=11 // pred_check
          %p560 = pneg %p395
        $region74: #{tpu_custom_call.1} parent=11 // pred_check_branch
          %562 = sbr.rel (%p560) target = $region76
        $region75: #{tpu_custom_call.1} parent=11 // pred_region
          _
        $region76: #{tpu_custom_call.1} parent=11 // pred_fallthru
          _
        // Predicated region
        $region77: #{tpu_custom_call.1} parent=11 // pred_check
          %p563 = pneg %p416
        $region78: #{tpu_custom_call.1} parent=11 // pred_check_branch
          %565 = sbr.rel (%p563) target = $region80
        $region79: #{tpu_custom_call.1} parent=11 // pred_region
          _
        $region80: #{tpu_custom_call.1} parent=11 // pred_fallthru
          _
      $region12: #{tpu_custom_call.1} parent=5 // pred_fallthru
        _
      %p566 = scmp.lt.s32.totalorder %s33, 2
      // Predicated region
      $region81: #{tpu_custom_call.1} parent=5 // pred_check
        %p567 = pneg %p566
      $region82: #{tpu_custom_call.1} parent=5 // pred_check_branch
        %569 = sbr.rel (%p567) target = $region84
      $region83: #{tpu_custom_call.1} parent=5 // pred_region
        // Predicated region
        $region85: #{tpu_custom_call.1} parent=83 // pred_check
          %p570 = pneg %p53
        $region86: #{tpu_custom_call.1} parent=83 // pred_check_branch
          %572 = sbr.rel (%p570) target = $region88
        $region87: #{tpu_custom_call.1} parent=83 // pred_region
          %s573 = sand.u32 %s43, 1
          %s574 = scalar_lea.sflag [#allocation3], %s573
          %s575 = sand.u32 %s43, 1
          %s576 = smul.addr %s575, 8
          %s577 = scalar_lea.vmem [#allocation2], %s576
          %s579 = ssub.s32 128, 128
          %580 = vsyncadd %s574, %s579
          %s581 = smul.addr %s33, 128
          %s582 = scalar_lea.hbm %s0, %s581
          %s584 = sshll.u32 %s577, 4
          %s585 = int_to_ptr.vmem [resolvable:$true] %s584
          %587 = dma.hbm_to_vmem [thread:$0]  %s582, 128, %s585, %s574
        $region88: #{tpu_custom_call.1} parent=83 // pred_fallthru
          _
      $region84: #{tpu_custom_call.1} parent=5 // pred_fallthru
        _
      %p588 = scmp.le.s32.totalorder 1, %s33
      %p589 = scmp.lt.s32.totalorder %s33, 3
      %p590 = pnand %p588, %p589
      %p591 = pneg %p590
      // Predicated region
      $region89: #{tpu_custom_call.1} parent=5 // pred_check
        _
      $region90: #{tpu_custom_call.1} parent=5 // pred_check_branch
        %593 = sbr.rel (%p590) target = $region92
      $region91: #{tpu_custom_call.1} parent=5 // pred_region
        %s594 = ssub.s32 %s33, 1
        %s595 = sand.u32 %s46, 1
        %s596 = scalar_lea.sflag [#allocation3], %s595
        %s597 = sand.u32 %s46, 1
        %s598 = smul.addr %s597, 8
        %s599 = scalar_lea.vmem [#allocation2], %s598
        // Predicated region
        $region93: #{tpu_custom_call.1} parent=91 // pred_check
          %p600 = pneg %p59
        $region94: #{tpu_custom_call.1} parent=91 // pred_check_branch
          %602 = sbr.rel (%p600) target = $region96
        $region95: #{tpu_custom_call.1} parent=91 // pred_region
          %603 = dma.done %s596, 128
        $region96: #{tpu_custom_call.1} parent=91 // pred_fallthru
          _
        // Predicated region
        $region97: #{tpu_custom_call.1} parent=91 // pred_check
          %p604 = pneg %p80
        $region98: #{tpu_custom_call.1} parent=91 // pred_check_branch
          %606 = sbr.rel (%p604) target = $region100
        $region99: #{tpu_custom_call.1} parent=91 // pred_region
          %607 = dma.done [#allocation6], 128
        $region100: #{tpu_custom_call.1} parent=91 // pred_fallthru
          _
        // Predicated region
        $region101: #{tpu_custom_call.1} parent=91 // pred_check
          %p608 = pneg %p101
        $region102: #{tpu_custom_call.1} parent=91 // pred_check_branch
          %610 = sbr.rel (%p608) target = $region104
        $region103: #{tpu_custom_call.1} parent=91 // pred_region
          %611 = dma.done [#allocation6], 256
        $region104: #{tpu_custom_call.1} parent=91 // pred_fallthru
          _
        // Predicated region
        $region105: #{tpu_custom_call.1} parent=91 // pred_check
          %p612 = pneg %p143
        $region106: #{tpu_custom_call.1} parent=91 // pred_check_branch
          %614 = sbr.rel (%p612) target = $region108
        $region107: #{tpu_custom_call.1} parent=91 // pred_region
          %615 = dma.done [#allocation9], 256
        $region108: #{tpu_custom_call.1} parent=91 // pred_fallthru
          _
        // Predicated region
        $region109: #{tpu_custom_call.1} parent=91 // pred_check
          %p616 = pneg %p185
        $region110: #{tpu_custom_call.1} parent=91 // pred_check_branch
          %618 = sbr.rel (%p616) target = $region112
        $region111: #{tpu_custom_call.1} parent=91 // pred_region
          %619 = dma.done [#allocation9], 512
        $region112: #{tpu_custom_call.1} parent=91 // pred_fallthru
          _
        // Predicated region
        $region113: #{tpu_custom_call.1} parent=91 // pred_check
          %p620 = pneg %p227
        $region114: #{tpu_custom_call.1} parent=91 // pred_check_branch
          %622 = sbr.rel (%p620) target = $region116
        $region115: #{tpu_custom_call.1} parent=91 // pred_region
          %623 = dma.done [#allocation12], 512
        $region116: #{tpu_custom_call.1} parent=91 // pred_fallthru
          _
        // Predicated region
        $region117: #{tpu_custom_call.1} parent=91 // pred_check
          %p624 = pneg %p353
        $region118: #{tpu_custom_call.1} parent=91 // pred_check_branch
          %626 = sbr.rel (%p624) target = $region120
        $region119: #{tpu_custom_call.1} parent=91 // pred_region
          %627 = dma.done [#allocation12], 512
        $region120: #{tpu_custom_call.1} parent=91 // pred_fallthru
          _
        %s628 = sand.u32 %s46, 1
        %s629 = scalar_lea.sflag [#allocation3], %s628
        %s630 = sand.u32 %s46, 1
        %s631 = smul.addr %s630, 8
        %s632 = scalar_lea.vmem [#allocation2], %s631
        %p633 = pneg %p59
        %p634 = pneg %p56
        %p635 = pneg %p80
        %p636 = pneg %p77
        %p637 = pneg %p101
        %p638 = pneg %p98
        %p639 = pneg %p122
        %p640 = pneg %p119
        %p641 = pneg %p143
        %p642 = pneg %p140
        %p643 = pneg %p164
        %p644 = pneg %p161
        %p645 = pneg %p185
        %p646 = pneg %p182
        %p647 = pneg %p206
        %p648 = pneg %p203
        %p649 = pneg %p227
        %p650 = pneg %p224
        %p651 = pneg %p248
        %p652 = pneg %p245
        %p653 = pneg %p269
        %p654 = pneg %p266
        %p655 = pneg %p290
        %p656 = pneg %p287
        %p657 = pneg %p311
        %p658 = pneg %p308
        %p659 = pneg %p332
        %p660 = pneg %p329
        %p661 = pneg %p353
        %p662 = pneg %p350
        %p663 = pneg %p374
        %p664 = pneg %p371
        %p665 = pneg %p395
        %p666 = pneg %p392
        %p667 = pneg %p416
        %p668 = pneg %p413
        %p669 = pneg %p442
        %p670 = pneg %p439
        %s671 = sand.u32 %s429, 1
        %s672 = scalar_lea.sflag [#allocation4], %s671
        %s673 = sand.u32 %s429, 1
        %s674 = smul.addr %s673, 8
        %s675 = scalar_lea.vmem [#allocation14], %s674
        %v676 = vld [vmem:[%s599] sm:$0xff]
        %v677 = vld [vmem:[#allocation5] sm:$0xff]
        %v678 = vadd.f32 %v676, %v677
        %v679 = vld [vmem:[#allocation7] sm:$0xff]
        %v680 = vld [vmem:[#allocation7 + $0x8] sm:$0xff]
        %v681 = vld [vmem:[%s3] sm:$0x1]
        %v683 = vlaneseq
        %v684 = vshrl.u32 %v683, 7
        %v685 = vsub.s32 0, %v684
        %v686 = vrot.slane %v681, %v685
        %vm688 = vcmask 130048
        %v690 = vsel %vm688, %v678, 0
        %692 = vmatprep.subr.mxu0 0.0
        %693 = vmatpush1.msra.mxu0 %v679
        %694 = vmatprep.subr.mxu0 0.0
        %695 = vmatpush1.msra.mxu0 %v680
        %696 = vmatprep.subr.mxu0 0.0
        %697 = vmatpush1.msra.mxu0 0.0
        %698 = vmatprep.subr.mxu0 0.0
        %699 = vmatpush1.msra.mxu0 0.0
        %700 = vmatprep.subr.mxu0 0.0
        %701 = vmatpush1.msra.mxu0 0.0
        %702 = vmatprep.subr.mxu0 0.0
        %703 = vmatpush1.msra.mxu0 0.0
        %704 = vmatprep.subr.mxu0 0.0
        %705 = vmatpush1.msra.mxu0 0.0
        %706 = vmatprep.subr.mxu0 0.0
        %707 = vmatpush1.msra.mxu0 0.0
        %708 = vmatprep.subr.mxu0 0.0
        %709 = vmatpush1.msra.mxu0 0.0
        %710 = vmatprep.subr.mxu0 0.0
        %711 = vmatpush1.msra.mxu0 0.0
        %712 = vmatprep.subr.mxu0 0.0
        %713 = vmatpush1.msra.mxu0 0.0
        %714 = vmatprep.subr.mxu0 0.0
        %715 = vmatpush1.msra.mxu0 0.0
        %716 = vmatprep.subr.mxu0 0.0
        %717 = vmatpush1.msra.mxu0 0.0
        %718 = vmatprep.subr.mxu0 0.0
        %719 = vmatpush1.msra.mxu0 0.0
        %720 = vmatprep.subr.mxu0 0.0
        %721 = vmatpush1.msra.mxu0 0.0
        %722 = vmatprep.subr.mxu0 0.0
        %723 = vmatpush1.msra.mxu0 0.0
        %724 = vmatprep.subr.mxu0 0.0
        %725 = vmatpush1.msra.mxu0 0.0
        %726 = vmatprep.subr.mxu0 0.0
        %727 = vmatpush1.msra.mxu0 0.0
        %728 = vmatprep.subr.mxu0 0.0
        %729 = vmatpush1.msra.mxu0 0.0
        %730 = vmatprep.subr.mxu0 0.0
        %731 = vmatpush1.msra.mxu0 0.0
        %732 = vmatprep.subr.mxu0 0.0
        %733 = vmatpush1.msra.mxu0 0.0
        %734 = vmatprep.subr.mxu0 0.0
        %735 = vmatpush1.msra.mxu0 0.0
        %736 = vmatprep.subr.mxu0 0.0
        %737 = vmatpush1.msra.mxu0 0.0
        %738 = vmatprep.subr.mxu0 0.0
        %739 = vmatpush1.msra.mxu0 0.0
        %740 = vmatprep.subr.mxu0 0.0
        %741 = vmatpush1.msra.mxu0 0.0
        %742 = vmatprep.subr.mxu0 0.0
        %743 = vmatpush1.msra.mxu0 0.0
        %744 = vmatprep.subr.mxu0 0.0
        %745 = vmatpush1.msra.mxu0 0.0
        %746 = vmatprep.subr.mxu0 0.0
        %747 = vmatpush1.msra.mxu0 0.0
        %748 = vmatprep.subr.mxu0 0.0
        %749 = vmatpush1.msra.mxu0 0.0
        %750 = vmatprep.subr.mxu0 0.0
        %751 = vmatpush1.msra.mxu0 0.0
        %752 = vmatprep.subr.mxu0 0.0
        %753 = vmatpush1.msra.mxu0 0.0
        %754 = vmatprep.subr.mxu0 0.0
        %755 = vmatpush1.msra.mxu0 0.0
        %756 = vmatprep.mubr.f32.mxu0 0.0
        %757 = vmatmul.mubr.f32.gmra.mrb[0].mxu0 %v690
        %v758 = vpop.f32.mrb[0].mxu0
        %v759 = vadd.f32 %v686, %v758
        %v760 = vpop.f32.mrb[0].mxu0
        %761 = vdwg.mxu0
        %v762 = vld [vmem:[#allocation8] sm:$0xff]
        %v763 = vld [vmem:[#allocation8 + $0x8] sm:$0xff]
        %v764 = vld [vmem:[%s5] sm:$0x1]
        %v766 = vlaneseq
        %v767 = vshrl.u32 %v766, 7
        %v768 = vsub.s32 0, %v767
        %v769 = vrot.slane %v764, %v768
        %v772 = vsel %vm688, %v759, 0
        %774 = vmatprep.subr.mxu0 0.0
        %775 = vmatpush1.msra.mxu0 %v762
        %776 = vmatprep.subr.mxu0 0.0
        %777 = vmatpush1.msra.mxu0 %v763
        %778 = vmatprep.subr.mxu0 0.0
        %779 = vmatpush1.msra.mxu0 0.0
        %780 = vmatprep.subr.mxu0 0.0
        %781 = vmatpush1.msra.mxu0 0.0
        %782 = vmatprep.subr.mxu0 0.0
        %783 = vmatpush1.msra.mxu0 0.0
        %784 = vmatprep.subr.mxu0 0.0
        %785 = vmatpush1.msra.mxu0 0.0
        %786 = vmatprep.subr.mxu0 0.0
        %787 = vmatpush1.msra.mxu0 0.0
        %788 = vmatprep.subr.mxu0 0.0
        %789 = vmatpush1.msra.mxu0 0.0
        %790 = vmatprep.subr.mxu0 0.0
        %791 = vmatpush1.msra.mxu0 0.0
        %792 = vmatprep.subr.mxu0 0.0
        %793 = vmatpush1.msra.mxu0 0.0
        %794 = vmatprep.subr.mxu0 0.0
        %795 = vmatpush1.msra.mxu0 0.0
        %796 = vmatprep.subr.mxu0 0.0
        %797 = vmatpush1.msra.mxu0 0.0
        %798 = vmatprep.subr.mxu0 0.0
        %799 = vmatpush1.msra.mxu0 0.0
        %800 = vmatprep.subr.mxu0 0.0
        %801 = vmatpush1.msra.mxu0 0.0
        %802 = vmatprep.subr.mxu0 0.0
        %803 = vmatpush1.msra.mxu0 0.0
        %804 = vmatprep.subr.mxu0 0.0
        %805 = vmatpush1.msra.mxu0 0.0
        %806 = vmatprep.subr.mxu0 0.0
        %807 = vmatpush1.msra.mxu0 0.0
        %808 = vmatprep.subr.mxu0 0.0
        %809 = vmatpush1.msra.mxu0 0.0
        %810 = vmatprep.subr.mxu0 0.0
        %811 = vmatpush1.msra.mxu0 0.0
        %812 = vmatprep.subr.mxu0 0.0
        %813 = vmatpush1.msra.mxu0 0.0
        %814 = vmatprep.subr.mxu0 0.0
        %815 = vmatpush1.msra.mxu0 0.0
        %816 = vmatprep.subr.mxu0 0.0
        %817 = vmatpush1.msra.mxu0 0.0
        %818 = vmatprep.subr.mxu0 0.0
        %819 = vmatpush1.msra.mxu0 0.0
        %820 = vmatprep.subr.mxu0 0.0
        %821 = vmatpush1.msra.mxu0 0.0
        %822 = vmatprep.subr.mxu0 0.0
        %823 = vmatpush1.msra.mxu0 0.0
        %824 = vmatprep.subr.mxu0 0.0
        %825 = vmatpush1.msra.mxu0 0.0
        %826 = vmatprep.subr.mxu0 0.0
        %827 = vmatpush1.msra.mxu0 0.0
        %828 = vmatprep.subr.mxu0 0.0
        %829 = vmatpush1.msra.mxu0 0.0
        %830 = vmatprep.subr.mxu0 0.0
        %831 = vmatpush1.msra.mxu0 0.0
        %832 = vmatprep.subr.mxu0 0.0
        %833 = vmatpush1.msra.mxu0 0.0
        %834 = vmatprep.subr.mxu0 0.0
        %835 = vmatpush1.msra.mxu0 0.0
        %836 = vmatprep.subr.mxu0 0.0
        %837 = vmatpush1.msra.mxu0 0.0
        %838 = vmatprep.mubr.f32.mxu0 0.0
        %839 = vmatmul.mubr.f32.gmra.mrb[0].mxu0 %v772
        %v840 = vpop.f32.mrb[0].mxu0
        %v841 = vadd.f32 %v769, %v840
        %v842 = vpop.f32.mrb[0].mxu0
        %843 = vdwg.mxu0
        %v844 = vld [vmem:[#allocation10] sm:$0xff]
        %v845 = vld [vmem:[#allocation10 + $0x8] sm:$0xff]
        %v846 = vld [vmem:[#allocation10 + $0x10] sm:$0xff]
        %v847 = vld [vmem:[#allocation10 + $0x18] sm:$0xff]
        %v848 = vld [vmem:[%s7] sm:$0x1]
        %v850 = vlaneseq
        %v851 = vshrl.u32 %v850, 7
        %v852 = vsub.s32 0, %v851
        %v853 = vrot.slane %v848, %v852
        %vm855 = vcmask 261120
        %v857 = vsel %vm855, %v841, 0
        %859 = vmatprep.subr.mxu0 0.0
        %860 = vmatpush1.msra.mxu0 %v844
        %861 = vmatprep.subr.mxu0 0.0
        %862 = vmatpush1.msra.mxu0 %v845
        %863 = vmatprep.subr.mxu0 0.0
        %864 = vmatpush1.msra.mxu0 %v846
        %865 = vmatprep.subr.mxu0 0.0
        %866 = vmatpush1.msra.mxu0 %v847
        %867 = vmatprep.subr.mxu0 0.0
        %868 = vmatpush1.msra.mxu0 0.0
        %869 = vmatprep.subr.mxu0 0.0
        %870 = vmatpush1.msra.mxu0 0.0
        %871 = vmatprep.subr.mxu0 0.0
        %872 = vmatpush1.msra.mxu0 0.0
        %873 = vmatprep.subr.mxu0 0.0
        %874 = vmatpush1.msra.mxu0 0.0
        %875 = vmatprep.subr.mxu0 0.0
        %876 = vmatpush1.msra.mxu0 0.0
        %877 = vmatprep.subr.mxu0 0.0
        %878 = vmatpush1.msra.mxu0 0.0
        %879 = vmatprep.subr.mxu0 0.0
        %880 = vmatpush1.msra.mxu0 0.0
        %881 = vmatprep.subr.mxu0 0.0
        %882 = vmatpush1.msra.mxu0 0.0
        %883 = vmatprep.subr.mxu0 0.0
        %884 = vmatpush1.msra.mxu0 0.0
        %885 = vmatprep.subr.mxu0 0.0
        %886 = vmatpush1.msra.mxu0 0.0
        %887 = vmatprep.subr.mxu0 0.0
        %888 = vmatpush1.msra.mxu0 0.0
        %889 = vmatprep.subr.mxu0 0.0
        %890 = vmatpush1.msra.mxu0 0.0
        %891 = vmatprep.subr.mxu0 0.0
        %892 = vmatpush1.msra.mxu0 0.0
        %893 = vmatprep.subr.mxu0 0.0
        %894 = vmatpush1.msra.mxu0 0.0
        %895 = vmatprep.subr.mxu0 0.0
        %896 = vmatpush1.msra.mxu0 0.0
        %897 = vmatprep.subr.mxu0 0.0
        %898 = vmatpush1.msra.mxu0 0.0
        %899 = vmatprep.subr.mxu0 0.0
        %900 = vmatpush1.msra.mxu0 0.0
        %901 = vmatprep.subr.mxu0 0.0
        %902 = vmatpush1.msra.mxu0 0.0
        %903 = vmatprep.subr.mxu0 0.0
        %904 = vmatpush1.msra.mxu0 0.0
        %905 = vmatprep.subr.mxu0 0.0
        %906 = vmatpush1.msra.mxu0 0.0
        %907 = vmatprep.subr.mxu0 0.0
        %908 = vmatpush1.msra.mxu0 0.0
        %909 = vmatprep.subr.mxu0 0.0
        %910 = vmatpush1.msra.mxu0 0.0
        %911 = vmatprep.subr.mxu0 0.0
        %912 = vmatpush1.msra.mxu0 0.0
        %913 = vmatprep.subr.mxu0 0.0
        %914 = vmatpush1.msra.mxu0 0.0
        %915 = vmatprep.subr.mxu0 0.0
        %916 = vmatpush1.msra.mxu0 0.0
        %917 = vmatprep.subr.mxu0 0.0
        %918 = vmatpush1.msra.mxu0 0.0
        %919 = vmatprep.subr.mxu0 0.0
        %920 = vmatpush1.msra.mxu0 0.0
        %921 = vmatprep.subr.mxu0 0.0
        %922 = vmatpush1.msra.mxu0 0.0
        %923 = vmatprep.mubr.f32.mxu0 0.0
        %924 = vmatmul.mubr.f32.gmra.mrb[0].mxu0 %v857
        %v925 = vpop.f32.mrb[0].mxu0
        %v926 = vadd.f32 %v853, %v925
        %v927 = vpop.f32.mrb[0].mxu0
        %928 = vdwg.mxu0
        %v929 = vld [vmem:[#allocation11] sm:$0xff]
        %v930 = vld [vmem:[#allocation11 + $0x8] sm:$0xff]
        %v931 = vld [vmem:[#allocation11 + $0x10] sm:$0xff]
        %v932 = vld [vmem:[#allocation11 + $0x18] sm:$0xff]
        %934 = vrot.lane.b32.xlu0 %v926, 96
        %v935 = vpop.permute.xlu0 %934
        %vm936 = vcmask 64512
        %v937 = vsel %vm936, %v926, 0
        %v939 = vsel %vm936, %v935, 0
        %941 = vmatprep.subr.mxu0 0.0
        %942 = vmatpush1.xpose.msra.mxu0 %v939
        %943 = vmatprep.subr.mxu0 0.0
        %944 = vmatpush1.xpose.msra.mxu0 0.0
        %945 = vmatprep.subr.mxu0 0.0
        %946 = vmatpush1.xpose.msra.mxu0 0.0
        %947 = vmatprep.subr.mxu0 0.0
        %948 = vmatpush1.xpose.msra.mxu0 0.0
        %949 = vmatprep.subr.mxu0 0.0
        %950 = vmatpush1.xpose.msra.mxu0 0.0
        %951 = vmatprep.subr.mxu0 0.0
        %952 = vmatpush1.xpose.msra.mxu0 0.0
        %953 = vmatprep.subr.mxu0 0.0
        %954 = vmatpush1.xpose.msra.mxu0 0.0
        %955 = vmatprep.subr.mxu0 0.0
        %956 = vmatpush1.xpose.msra.mxu0 0.0
        %957 = vmatprep.subr.mxu0 0.0
        %958 = vmatpush1.xpose.msra.mxu0 0.0
        %959 = vmatprep.subr.mxu0 0.0
        %960 = vmatpush1.xpose.msra.mxu0 0.0
        %961 = vmatprep.subr.mxu0 0.0
        %962 = vmatpush1.xpose.msra.mxu0 0.0
        %963 = vmatprep.subr.mxu0 0.0
        %964 = vmatpush1.xpose.msra.mxu0 0.0
        %965 = vmatprep.subr.mxu0 0.0
        %966 = vmatpush1.xpose.msra.mxu0 0.0
        %967 = vmatprep.subr.mxu0 0.0
        %968 = vmatpush1.xpose.msra.mxu0 0.0
        %969 = vmatprep.subr.mxu0 0.0
        %970 = vmatpush1.xpose.msra.mxu0 0.0
        %971 = vmatprep.subr.mxu0 0.0
        %972 = vmatpush1.xpose.msra.mxu0 0.0
        %973 = vmatprep.subr.mxu0 0.0
        %974 = vmatpush1.xpose.msra.mxu0 0.0
        %975 = vmatprep.subr.mxu0 0.0
        %976 = vmatpush1.xpose.msra.mxu0 0.0
        %977 = vmatprep.subr.mxu0 0.0
        %978 = vmatpush1.xpose.msra.mxu0 0.0
        %979 = vmatprep.subr.mxu0 0.0
        %980 = vmatpush1.xpose.msra.mxu0 0.0
        %981 = vmatprep.subr.mxu0 0.0
        %982 = vmatpush1.xpose.msra.mxu0 0.0
        %983 = vmatprep.subr.mxu0 0.0
        %984 = vmatpush1.xpose.msra.mxu0 0.0
        %985 = vmatprep.subr.mxu0 0.0
        %986 = vmatpush1.xpose.msra.mxu0 0.0
        %987 = vmatprep.subr.mxu0 0.0
        %988 = vmatpush1.xpose.msra.mxu0 0.0
        %989 = vmatprep.subr.mxu0 0.0
        %990 = vmatpush1.xpose.msra.mxu0 0.0
        %991 = vmatprep.subr.mxu0 0.0
        %992 = vmatpush1.xpose.msra.mxu0 0.0
        %993 = vmatprep.subr.mxu0 0.0
        %994 = vmatpush1.xpose.msra.mxu0 0.0
        %995 = vmatprep.subr.mxu0 0.0
        %996 = vmatpush1.xpose.msra.mxu0 0.0
        %997 = vmatprep.subr.mxu0 0.0
        %998 = vmatpush1.xpose.msra.mxu0 0.0
        %999 = vmatprep.subr.mxu0 0.0
        %1000 = vmatpush1.xpose.msra.mxu0 0.0
        %1001 = vmatprep.subr.mxu0 0.0
        %1002 = vmatpush1.xpose.msra.mxu0 0.0
        %1003 = vmatprep.subr.mxu0 0.0
        %1004 = vmatpush1.xpose.msra.mxu0 0.0
        %1005 = vmatprep.mubr.f32.mxu0 0.0
        %1006 = vmatmul.mubr.f32.gmra.mrb[0].mxu0 %v937
        %v1007 = vpop.f32.mrb[0].mxu0
        %v1008 = vadd.f32 0.0, %v1007
        %v1009 = vpop.f32.mrb[0].mxu0
        %1010 = vdwg.mxu0
        %v1011 = vmul.f32 %v1008, 0.35355338
        %v1012 = vsel %vm936, %v1011, -inf
        %1013 = vmax.xlane.f32.xlu0 %v1012
        %v1014 = vpop.xlane.xlu0 %1013
        %v1015 = vsub.f32 %v1011, %v1014
        %v1016 = vmul.f32 %v1015, 1.442695
        %v1017 = vpow.pop %v1016
        %v1018 = vsel %vm936, %v1017, 0.0
        %1019 = vadd.xlane.f32.xlu0 %v1018
        %v1020 = vpop.xlane.xlu0 %1019
        %v1021 = vrcp.pop %v1020
        %v1022 = vmul.f32 %v1017, %v1021
        %1023 = vrot.lane.b32.xlu0 %v926, 64
        %v1024 = vpop.permute.xlu0 %1023
        %v1027 = vsel %vm936, %v1022, 0
        %1029 = vmatprep.subr.mxu0 0.0
        %1030 = vmatpush1.msra.mxu0 %v1024
        %1031 = vmatprep.subr.mxu0 0.0
        %1032 = vmatpush1.msra.mxu0 0.0
        %1033 = vmatprep.subr.mxu0 0.0
        %1034 = vmatpush1.msra.mxu0 0.0
        %1035 = vmatprep.subr.mxu0 0.0
        %1036 = vmatpush1.msra.mxu0 0.0
        %1037 = vmatprep.subr.mxu0 0.0
        %1038 = vmatpush1.msra.mxu0 0.0
        %1039 = vmatprep.subr.mxu0 0.0
        %1040 = vmatpush1.msra.mxu0 0.0
        %1041 = vmatprep.subr.mxu0 0.0
        %1042 = vmatpush1.msra.mxu0 0.0
        %1043 = vmatprep.subr.mxu0 0.0
        %1044 = vmatpush1.msra.mxu0 0.0
        %1045 = vmatprep.subr.mxu0 0.0
        %1046 = vmatpush1.msra.mxu0 0.0
        %1047 = vmatprep.subr.mxu0 0.0
        %1048 = vmatpush1.msra.mxu0 0.0
        %1049 = vmatprep.subr.mxu0 0.0
        %1050 = vmatpush1.msra.mxu0 0.0
        %1051 = vmatprep.subr.mxu0 0.0
        %1052 = vmatpush1.msra.mxu0 0.0
        %1053 = vmatprep.subr.mxu0 0.0
        %1054 = vmatpush1.msra.mxu0 0.0
        %1055 = vmatprep.subr.mxu0 0.0
        %1056 = vmatpush1.msra.mxu0 0.0
        %1057 = vmatprep.subr.mxu0 0.0
        %1058 = vmatpush1.msra.mxu0 0.0
        %1059 = vmatprep.subr.mxu0 0.0
        %1060 = vmatpush1.msra.mxu0 0.0
        %1061 = vmatprep.subr.mxu0 0.0
        %1062 = vmatpush1.msra.mxu0 0.0
        %1063 = vmatprep.subr.mxu0 0.0
        %1064 = vmatpush1.msra.mxu0 0.0
        %1065 = vmatprep.subr.mxu0 0.0
        %1066 = vmatpush1.msra.mxu0 0.0
        %1067 = vmatprep.subr.mxu0 0.0
        %1068 = vmatpush1.msra.mxu0 0.0
        %1069 = vmatprep.subr.mxu0 0.0
        %1070 = vmatpush1.msra.mxu0 0.0
        %1071 = vmatprep.subr.mxu0 0.0
        %1072 = vmatpush1.msra.mxu0 0.0
        %1073 = vmatprep.subr.mxu0 0.0
        %1074 = vmatpush1.msra.mxu0 0.0
        %1075 = vmatprep.subr.mxu0 0.0
        %1076 = vmatpush1.msra.mxu0 0.0
        %1077 = vmatprep.subr.mxu0 0.0
        %1078 = vmatpush1.msra.mxu0 0.0
        %1079 = vmatprep.subr.mxu0 0.0
        %1080 = vmatpush1.msra.mxu0 0.0
        %1081 = vmatprep.subr.mxu0 0.0
        %1082 = vmatpush1.msra.mxu0 0.0
        %1083 = vmatprep.subr.mxu0 0.0
        %1084 = vmatpush1.msra.mxu0 0.0
        %1085 = vmatprep.subr.mxu0 0.0
        %1086 = vmatpush1.msra.mxu0 0.0
        %1087 = vmatprep.subr.mxu0 0.0
        %1088 = vmatpush1.msra.mxu0 0.0
        %1089 = vmatprep.subr.mxu0 0.0
        %1090 = vmatpush1.msra.mxu0 0.0
        %1091 = vmatprep.subr.mxu0 0.0
        %1092 = vmatpush1.msra.mxu0 0.0
        %1093 = vmatprep.mubr.f32.mxu0 0.0
        %1094 = vmatmul.mubr.f32.gmra.mrb[0].mxu0 %v1027
        %v1095 = vpop.f32.mrb[0].mxu0
        %v1096 = vadd.f32 0.0, %v1095
        %v1097 = vpop.f32.mrb[0].mxu0
        %1098 = vdwg.mxu0
        %1099 = vrot.lane.b32.xlu0 %v926, 120
        %v1100 = vpop.permute.xlu0 %1099
        %1101 = vrot.lane.b32.xlu0 %v926, 88
        %v1102 = vpop.permute.xlu0 %1101
        %v1103 = vsel %vm936, %v1100, 0
        %v1105 = vsel %vm936, %v1102, 0
        %1107 = vmatprep.subr.mxu0 0.0
        %1108 = vmatpush1.xpose.msra.mxu0 %v1105
        %1109 = vmatprep.subr.mxu0 0.0
        %1110 = vmatpush1.xpose.msra.mxu0 0.0
        %1111 = vmatprep.subr.mxu0 0.0
        %1112 = vmatpush1.xpose.msra.mxu0 0.0
        %1113 = vmatprep.subr.mxu0 0.0
        %1114 = vmatpush1.xpose.msra.mxu0 0.0
        %1115 = vmatprep.subr.mxu0 0.0
        %1116 = vmatpush1.xpose.msra.mxu0 0.0
        %1117 = vmatprep.subr.mxu0 0.0
        %1118 = vmatpush1.xpose.msra.mxu0 0.0
        %1119 = vmatprep.subr.mxu0 0.0
        %1120 = vmatpush1.xpose.msra.mxu0 0.0
        %1121 = vmatprep.subr.mxu0 0.0
        %1122 = vmatpush1.xpose.msra.mxu0 0.0
        %1123 = vmatprep.subr.mxu0 0.0
        %1124 = vmatpush1.xpose.msra.mxu0 0.0
        %1125 = vmatprep.subr.mxu0 0.0
        %1126 = vmatpush1.xpose.msra.mxu0 0.0
        %1127 = vmatprep.subr.mxu0 0.0
        %1128 = vmatpush1.xpose.msra.mxu0 0.0
        %1129 = vmatprep.subr.mxu0 0.0
        %1130 = vmatpush1.xpose.msra.mxu0 0.0
        %1131 = vmatprep.subr.mxu0 0.0
        %1132 = vmatpush1.xpose.msra.mxu0 0.0
        %1133 = vmatprep.subr.mxu0 0.0
        %1134 = vmatpush1.xpose.msra.mxu0 0.0
        %1135 = vmatprep.subr.mxu0 0.0
        %1136 = vmatpush1.xpose.msra.mxu0 0.0
        %1137 = vmatprep.subr.mxu0 0.0
        %1138 = vmatpush1.xpose.msra.mxu0 0.0
        %1139 = vmatprep.subr.mxu0 0.0
        %1140 = vmatpush1.xpose.msra.mxu0 0.0
        %1141 = vmatprep.subr.mxu0 0.0
        %1142 = vmatpush1.xpose.msra.mxu0 0.0
        %1143 = vmatprep.subr.mxu0 0.0
        %1144 = vmatpush1.xpose.msra.mxu0 0.0
        %1145 = vmatprep.subr.mxu0 0.0
        %1146 = vmatpush1.xpose.msra.mxu0 0.0
        %1147 = vmatprep.subr.mxu0 0.0
        %1148 = vmatpush1.xpose.msra.mxu0 0.0
        %1149 = vmatprep.subr.mxu0 0.0
        %1150 = vmatpush1.xpose.msra.mxu0 0.0
        %1151 = vmatprep.subr.mxu0 0.0
        %1152 = vmatpush1.xpose.msra.mxu0 0.0
        %1153 = vmatprep.subr.mxu0 0.0
        %1154 = vmatpush1.xpose.msra.mxu0 0.0
        %1155 = vmatprep.subr.mxu0 0.0
        %1156 = vmatpush1.xpose.msra.mxu0 0.0
        %1157 = vmatprep.subr.mxu0 0.0
        %1158 = vmatpush1.xpose.msra.mxu0 0.0
        %1159 = vmatprep.subr.mxu0 0.0
        %1160 = vmatpush1.xpose.msra.mxu0 0.0
        %1161 = vmatprep.subr.mxu0 0.0
        %1162 = vmatpush1.xpose.msra.mxu0 0.0
        %1163 = vmatprep.subr.mxu0 0.0
        %1164 = vmatpush1.xpose.msra.mxu0 0.0
        %1165 = vmatprep.subr.mxu0 0.0
        %1166 = vmatpush1.xpose.msra.mxu0 0.0
        %1167 = vmatprep.subr.mxu0 0.0
        %1168 = vmatpush1.xpose.msra.mxu0 0.0
        %1169 = vmatprep.subr.mxu0 0.0
        %1170 = vmatpush1.xpose.msra.mxu0 0.0
        %1171 = vmatprep.mubr.f32.mxu0 0.0
        %1172 = vmatmul.mubr.f32.gmra.mrb[0].mxu0 %v1103
        %v1173 = vpop.f32.mrb[0].mxu0
        %v1174 = vadd.f32 0.0, %v1173
        %v1175 = vpop.f32.mrb[0].mxu0
        %1176 = vdwg.mxu0
        %v1177 = vmul.f32 %v1174, 0.35355338
        %v1178 = vsel %vm936, %v1177, -inf
        %1179 = vmax.xlane.f32.xlu0 %v1178
        %v1180 = vpop.xlane.xlu0 %1179
        %v1181 = vsub.f32 %v1177, %v1180
        %v1182 = vmul.f32 %v1181, 1.442695
        %v1183 = vpow.pop %v1182
        %v1184 = vsel %vm936, %v1183, 0.0
        %1185 = vadd.xlane.f32.xlu0 %v1184
        %v1186 = vpop.xlane.xlu0 %1185
        %v1187 = vrcp.pop %v1186
        %v1188 = vmul.f32 %v1183, %v1187
        %1189 = vrot.lane.b32.xlu0 %v926, 56
        %v1190 = vpop.permute.xlu0 %1189
        %v1193 = vsel %vm936, %v1188, 0
        %1195 = vmatprep.subr.mxu0 0.0
        %1196 = vmatpush1.msra.mxu0 %v1190
        %1197 = vmatprep.subr.mxu0 0.0
        %1198 = vmatpush1.msra.mxu0 0.0
        %1199 = vmatprep.subr.mxu0 0.0
        %1200 = vmatpush1.msra.mxu0 0.0
        %1201 = vmatprep.subr.mxu0 0.0
        %1202 = vmatpush1.msra.mxu0 0.0
        %1203 = vmatprep.subr.mxu0 0.0
        %1204 = vmatpush1.msra.mxu0 0.0
        %1205 = vmatprep.subr.mxu0 0.0
        %1206 = vmatpush1.msra.mxu0 0.0
        %1207 = vmatprep.subr.mxu0 0.0
        %1208 = vmatpush1.msra.mxu0 0.0
        %1209 = vmatprep.subr.mxu0 0.0
        %1210 = vmatpush1.msra.mxu0 0.0
        %1211 = vmatprep.subr.mxu0 0.0
        %1212 = vmatpush1.msra.mxu0 0.0
        %1213 = vmatprep.subr.mxu0 0.0
        %1214 = vmatpush1.msra.mxu0 0.0
        %1215 = vmatprep.subr.mxu0 0.0
        %1216 = vmatpush1.msra.mxu0 0.0
        %1217 = vmatprep.subr.mxu0 0.0
        %1218 = vmatpush1.msra.mxu0 0.0
        %1219 = vmatprep.subr.mxu0 0.0
        %1220 = vmatpush1.msra.mxu0 0.0
        %1221 = vmatprep.subr.mxu0 0.0
        %1222 = vmatpush1.msra.mxu0 0.0
        %1223 = vmatprep.subr.mxu0 0.0
        %1224 = vmatpush1.msra.mxu0 0.0
        %1225 = vmatprep.subr.mxu0 0.0
        %1226 = vmatpush1.msra.mxu0 0.0
        %1227 = vmatprep.subr.mxu0 0.0
        %1228 = vmatpush1.msra.mxu0 0.0
        %1229 = vmatprep.subr.mxu0 0.0
        %1230 = vmatpush1.msra.mxu0 0.0
        %1231 = vmatprep.subr.mxu0 0.0
        %1232 = vmatpush1.msra.mxu0 0.0
        %1233 = vmatprep.subr.mxu0 0.0
        %1234 = vmatpush1.msra.mxu0 0.0
        %1235 = vmatprep.subr.mxu0 0.0
        %1236 = vmatpush1.msra.mxu0 0.0
        %1237 = vmatprep.subr.mxu0 0.0
        %1238 = vmatpush1.msra.mxu0 0.0
        %1239 = vmatprep.subr.mxu0 0.0
        %1240 = vmatpush1.msra.mxu0 0.0
        %1241 = vmatprep.subr.mxu0 0.0
        %1242 = vmatpush1.msra.mxu0 0.0
        %1243 = vmatprep.subr.mxu0 0.0
        %1244 = vmatpush1.msra.mxu0 0.0
        %1245 = vmatprep.subr.mxu0 0.0
        %1246 = vmatpush1.msra.mxu0 0.0
        %1247 = vmatprep.subr.mxu0 0.0
        %1248 = vmatpush1.msra.mxu0 0.0
        %1249 = vmatprep.subr.mxu0 0.0
        %1250 = vmatpush1.msra.mxu0 0.0
        %1251 = vmatprep.subr.mxu0 0.0
        %1252 = vmatpush1.msra.mxu0 0.0
        %1253 = vmatprep.subr.mxu0 0.0
        %1254 = vmatpush1.msra.mxu0 0.0
        %1255 = vmatprep.subr.mxu0 0.0
        %1256 = vmatpush1.msra.mxu0 0.0
        %1257 = vmatprep.subr.mxu0 0.0
        %1258 = vmatpush1.msra.mxu0 0.0
        %1259 = vmatprep.mubr.f32.mxu0 0.0
        %1260 = vmatmul.mubr.f32.gmra.mrb[0].mxu0 %v1193
        %v1261 = vpop.f32.mrb[0].mxu0
        %v1262 = vadd.f32 0.0, %v1261
        %v1263 = vpop.f32.mrb[0].mxu0
        %1264 = vdwg.mxu0
        %v1266 = vsel %vm936, %v1262, 0
        %1268 = vmatprep.subr.mxu0 0.0
        %1269 = vmatpush1.msra.mxu0 %v930
        %1270 = vmatprep.subr.mxu0 0.0
        %1271 = vmatpush1.msra.mxu0 0.0
        %1272 = vmatprep.subr.mxu0 0.0
        %1273 = vmatpush1.msra.mxu0 0.0
        %1274 = vmatprep.subr.mxu0 0.0
        %1275 = vmatpush1.msra.mxu0 0.0
        %1276 = vmatprep.subr.mxu0 0.0
        %1277 = vmatpush1.msra.mxu0 0.0
        %1278 = vmatprep.subr.mxu0 0.0
        %1279 = vmatpush1.msra.mxu0 0.0
        %1280 = vmatprep.subr.mxu0 0.0
        %1281 = vmatpush1.msra.mxu0 0.0
        %1282 = vmatprep.subr.mxu0 0.0
        %1283 = vmatpush1.msra.mxu0 0.0
        %1284 = vmatprep.subr.mxu0 0.0
        %1285 = vmatpush1.msra.mxu0 0.0
        %1286 = vmatprep.subr.mxu0 0.0
        %1287 = vmatpush1.msra.mxu0 0.0
        %1288 = vmatprep.subr.mxu0 0.0
        %1289 = vmatpush1.msra.mxu0 0.0
        %1290 = vmatprep.subr.mxu0 0.0
        %1291 = vmatpush1.msra.mxu0 0.0
        %1292 = vmatprep.subr.mxu0 0.0
        %1293 = vmatpush1.msra.mxu0 0.0
        %1294 = vmatprep.subr.mxu0 0.0
        %1295 = vmatpush1.msra.mxu0 0.0
        %1296 = vmatprep.subr.mxu0 0.0
        %1297 = vmatpush1.msra.mxu0 0.0
        %1298 = vmatprep.subr.mxu0 0.0
        %1299 = vmatpush1.msra.mxu0 0.0
        %1300 = vmatprep.subr.mxu0 0.0
        %1301 = vmatpush1.msra.mxu0 0.0
        %1302 = vmatprep.subr.mxu0 0.0
        %1303 = vmatpush1.msra.mxu0 0.0
        %1304 = vmatprep.subr.mxu0 0.0
        %1305 = vmatpush1.msra.mxu0 0.0
        %1306 = vmatprep.subr.mxu0 0.0
        %1307 = vmatpush1.msra.mxu0 0.0
        %1308 = vmatprep.subr.mxu0 0.0
        %1309 = vmatpush1.msra.mxu0 0.0
        %1310 = vmatprep.subr.mxu0 0.0
        %1311 = vmatpush1.msra.mxu0 0.0
        %1312 = vmatprep.subr.mxu0 0.0
        %1313 = vmatpush1.msra.mxu0 0.0
        %1314 = vmatprep.subr.mxu0 0.0
        %1315 = vmatpush1.msra.mxu0 0.0
        %1316 = vmatprep.subr.mxu0 0.0
        %1317 = vmatpush1.msra.mxu0 0.0
        %1318 = vmatprep.subr.mxu0 0.0
        %1319 = vmatpush1.msra.mxu0 0.0
        %1320 = vmatprep.subr.mxu0 0.0
        %1321 = vmatpush1.msra.mxu0 0.0
        %1322 = vmatprep.subr.mxu0 0.0
        %1323 = vmatpush1.msra.mxu0 0.0
        %1324 = vmatprep.subr.mxu0 0.0
        %1325 = vmatpush1.msra.mxu0 0.0
        %1326 = vmatprep.subr.mxu0 0.0
        %1327 = vmatpush1.msra.mxu0 0.0
        %1328 = vmatprep.subr.mxu0 0.0
        %1329 = vmatpush1.msra.mxu0 0.0
        %1330 = vmatprep.subr.mxu0 0.0
        %1331 = vmatpush1.msra.mxu0 0.0
        %1332 = vmatprep.mubr.f32.mxu0 0.0
        %1333 = vmatmul.mubr.f32.gmra.mrb[0].mxu0 %v1266
        %v1334 = vpop.f32.mrb[0].mxu0
        %v1335 = vadd.f32 0.0, %v1334
        %v1336 = vpop.f32.mrb[0].mxu0
        %1337 = vdwg.mxu0
        %v1339 = vsel %vm936, %v1096, 0
        %1341 = vmatprep.subr.mxu0 0.0
        %1342 = vmatpush1.msra.mxu0 %v929
        %1343 = vmatprep.subr.mxu0 0.0
        %1344 = vmatpush1.msra.mxu0 0.0
        %1345 = vmatprep.subr.mxu0 0.0
        %1346 = vmatpush1.msra.mxu0 0.0
        %1347 = vmatprep.subr.mxu0 0.0
        %1348 = vmatpush1.msra.mxu0 0.0
        %1349 = vmatprep.subr.mxu0 0.0
        %1350 = vmatpush1.msra.mxu0 0.0
        %1351 = vmatprep.subr.mxu0 0.0
        %1352 = vmatpush1.msra.mxu0 0.0
        %1353 = vmatprep.subr.mxu0 0.0
        %1354 = vmatpush1.msra.mxu0 0.0
        %1355 = vmatprep.subr.mxu0 0.0
        %1356 = vmatpush1.msra.mxu0 0.0
        %1357 = vmatprep.subr.mxu0 0.0
        %1358 = vmatpush1.msra.mxu0 0.0
        %1359 = vmatprep.subr.mxu0 0.0
        %1360 = vmatpush1.msra.mxu0 0.0
        %1361 = vmatprep.subr.mxu0 0.0
        %1362 = vmatpush1.msra.mxu0 0.0
        %1363 = vmatprep.subr.mxu0 0.0
        %1364 = vmatpush1.msra.mxu0 0.0
        %1365 = vmatprep.subr.mxu0 0.0
        %1366 = vmatpush1.msra.mxu0 0.0
        %1367 = vmatprep.subr.mxu0 0.0
        %1368 = vmatpush1.msra.mxu0 0.0
        %1369 = vmatprep.subr.mxu0 0.0
        %1370 = vmatpush1.msra.mxu0 0.0
        %1371 = vmatprep.subr.mxu0 0.0
        %1372 = vmatpush1.msra.mxu0 0.0
        %1373 = vmatprep.subr.mxu0 0.0
        %1374 = vmatpush1.msra.mxu0 0.0
        %1375 = vmatprep.subr.mxu0 0.0
        %1376 = vmatpush1.msra.mxu0 0.0
        %1377 = vmatprep.subr.mxu0 0.0
        %1378 = vmatpush1.msra.mxu0 0.0
        %1379 = vmatprep.subr.mxu0 0.0
        %1380 = vmatpush1.msra.mxu0 0.0
        %1381 = vmatprep.subr.mxu0 0.0
        %1382 = vmatpush1.msra.mxu0 0.0
        %1383 = vmatprep.subr.mxu0 0.0
        %1384 = vmatpush1.msra.mxu0 0.0
        %1385 = vmatprep.subr.mxu0 0.0
        %1386 = vmatpush1.msra.mxu0 0.0
        %1387 = vmatprep.subr.mxu0 0.0
        %1388 = vmatpush1.msra.mxu0 0.0
        %1389 = vmatprep.subr.mxu0 0.0
        %1390 = vmatpush1.msra.mxu0 0.0
        %1391 = vmatprep.subr.mxu0 0.0
        %1392 = vmatpush1.msra.mxu0 0.0
        %1393 = vmatprep.subr.mxu0 0.0
        %1394 = vmatpush1.msra.mxu0 0.0
        %1395 = vmatprep.subr.mxu0 0.0
        %1396 = vmatpush1.msra.mxu0 0.0
        %1397 = vmatprep.subr.mxu0 0.0
        %1398 = vmatpush1.msra.mxu0 0.0
        %1399 = vmatprep.subr.mxu0 0.0
        %1400 = vmatpush1.msra.mxu0 0.0
        %1401 = vmatprep.subr.mxu0 0.0
        %1402 = vmatpush1.msra.mxu0 0.0
        %1403 = vmatprep.subr.mxu0 0.0
        %1404 = vmatpush1.msra.mxu0 0.0
        %1405 = vmatprep.mubr.f32.mxu0 0.0
        %1406 = vmatmul.mubr.f32.gmra.mrb[0].mxu0 %v1339
        %v1407 = vpop.f32.mrb[0].mxu0
        %v1408 = vadd.f32 %v1335, %v1407
        %v1409 = vpop.f32.mrb[0].mxu0
        %1410 = vdwg.mxu0
        %1411 = vrot.lane.b32.xlu0 %v926, 112
        %v1412 = vpop.permute.xlu0 %1411
        %1413 = vrot.lane.b32.xlu0 %v926, 80
        %v1414 = vpop.permute.xlu0 %1413
        %v1415 = vsel %vm936, %v1412, 0
        %v1417 = vsel %vm936, %v1414, 0
        %1419 = vmatprep.subr.mxu0 0.0
        %1420 = vmatpush1.xpose.msra.mxu0 %v1417
        %1421 = vmatprep.subr.mxu0 0.0
        %1422 = vmatpush1.xpose.msra.mxu0 0.0
        %1423 = vmatprep.subr.mxu0 0.0
        %1424 = vmatpush1.xpose.msra.mxu0 0.0
        %1425 = vmatprep.subr.mxu0 0.0
        %1426 = vmatpush1.xpose.msra.mxu0 0.0
        %1427 = vmatprep.subr.mxu0 0.0
        %1428 = vmatpush1.xpose.msra.mxu0 0.0
        %1429 = vmatprep.subr.mxu0 0.0
        %1430 = vmatpush1.xpose.msra.mxu0 0.0
        %1431 = vmatprep.subr.mxu0 0.0
        %1432 = vmatpush1.xpose.msra.mxu0 0.0
        %1433 = vmatprep.subr.mxu0 0.0
        %1434 = vmatpush1.xpose.msra.mxu0 0.0
        %1435 = vmatprep.subr.mxu0 0.0
        %1436 = vmatpush1.xpose.msra.mxu0 0.0
        %1437 = vmatprep.subr.mxu0 0.0
        %1438 = vmatpush1.xpose.msra.mxu0 0.0
        %1439 = vmatprep.subr.mxu0 0.0
        %1440 = vmatpush1.xpose.msra.mxu0 0.0
        %1441 = vmatprep.subr.mxu0 0.0
        %1442 = vmatpush1.xpose.msra.mxu0 0.0
        %1443 = vmatprep.subr.mxu0 0.0
        %1444 = vmatpush1.xpose.msra.mxu0 0.0
        %1445 = vmatprep.subr.mxu0 0.0
        %1446 = vmatpush1.xpose.msra.mxu0 0.0
        %1447 = vmatprep.subr.mxu0 0.0
        %1448 = vmatpush1.xpose.msra.mxu0 0.0
        %1449 = vmatprep.subr.mxu0 0.0
        %1450 = vmatpush1.xpose.msra.mxu0 0.0
        %1451 = vmatprep.subr.mxu0 0.0
        %1452 = vmatpush1.xpose.msra.mxu0 0.0
        %1453 = vmatprep.subr.mxu0 0.0
        %1454 = vmatpush1.xpose.msra.mxu0 0.0
        %1455 = vmatprep.subr.mxu0 0.0
        %1456 = vmatpush1.xpose.msra.mxu0 0.0
        %1457 = vmatprep.subr.mxu0 0.0
        %1458 = vmatpush1.xpose.msra.mxu0 0.0
        %1459 = vmatprep.subr.mxu0 0.0
        %1460 = vmatpush1.xpose.msra.mxu0 0.0
        %1461 = vmatprep.subr.mxu0 0.0
        %1462 = vmatpush1.xpose.msra.mxu0 0.0
        %1463 = vmatprep.subr.mxu0 0.0
        %1464 = vmatpush1.xpose.msra.mxu0 0.0
        %1465 = vmatprep.subr.mxu0 0.0
        %1466 = vmatpush1.xpose.msra.mxu0 0.0
        %1467 = vmatprep.subr.mxu0 0.0
        %1468 = vmatpush1.xpose.msra.mxu0 0.0
        %1469 = vmatprep.subr.mxu0 0.0
        %1470 = vmatpush1.xpose.msra.mxu0 0.0
        %1471 = vmatprep.subr.mxu0 0.0
        %1472 = vmatpush1.xpose.msra.mxu0 0.0
        %1473 = vmatprep.subr.mxu0 0.0
        %1474 = vmatpush1.xpose.msra.mxu0 0.0
        %1475 = vmatprep.subr.mxu0 0.0
        %1476 = vmatpush1.xpose.msra.mxu0 0.0
        %1477 = vmatprep.subr.mxu0 0.0
        %1478 = vmatpush1.xpose.msra.mxu0 0.0
        %1479 = vmatprep.subr.mxu0 0.0
        %1480 = vmatpush1.xpose.msra.mxu0 0.0
        %1481 = vmatprep.subr.mxu0 0.0
        %1482 = vmatpush1.xpose.msra.mxu0 0.0
        %1483 = vmatprep.mubr.f32.mxu0 0.0
        %1484 = vmatmul.mubr.f32.gmra.mrb[0].mxu0 %v1415
        %v1485 = vpop.f32.mrb[0].mxu0
        %v1486 = vadd.f32 0.0, %v1485
        %v1487 = vpop.f32.mrb[0].mxu0
        %1488 = vdwg.mxu0
        %v1489 = vmul.f32 %v1486, 0.35355338
        %v1490 = vsel %vm936, %v1489, -inf
        %1491 = vmax.xlane.f32.xlu0 %v1490
        %v1492 = vpop.xlane.xlu0 %1491
        %v1493 = vsub.f32 %v1489, %v1492
        %v1494 = vmul.f32 %v1493, 1.442695
        %v1495 = vpow.pop %v1494
        %v1496 = vsel %vm936, %v1495, 0.0
        %1497 = vadd.xlane.f32.xlu0 %v1496
        %v1498 = vpop.xlane.xlu0 %1497
        %v1499 = vrcp.pop %v1498
        %v1500 = vmul.f32 %v1495, %v1499
        %1501 = vrot.lane.b32.xlu0 %v926, 48
        %v1502 = vpop.permute.xlu0 %1501
        %v1505 = vsel %vm936, %v1500, 0
        %1507 = vmatprep.subr.mxu0 0.0
        %1508 = vmatpush1.msra.mxu0 %v1502
        %1509 = vmatprep.subr.mxu0 0.0
        %1510 = vmatpush1.msra.mxu0 0.0
        %1511 = vmatprep.subr.mxu0 0.0
        %1512 = vmatpush1.msra.mxu0 0.0
        %1513 = vmatprep.subr.mxu0 0.0
        %1514 = vmatpush1.msra.mxu0 0.0
        %1515 = vmatprep.subr.mxu0 0.0
        %1516 = vmatpush1.msra.mxu0 0.0
        %1517 = vmatprep.subr.mxu0 0.0
        %1518 = vmatpush1.msra.mxu0 0.0
        %1519 = vmatprep.subr.mxu0 0.0
        %1520 = vmatpush1.msra.mxu0 0.0
        %1521 = vmatprep.subr.mxu0 0.0
        %1522 = vmatpush1.msra.mxu0 0.0
        %1523 = vmatprep.subr.mxu0 0.0
        %1524 = vmatpush1.msra.mxu0 0.0
        %1525 = vmatprep.subr.mxu0 0.0
        %1526 = vmatpush1.msra.mxu0 0.0
        %1527 = vmatprep.subr.mxu0 0.0
        %1528 = vmatpush1.msra.mxu0 0.0
        %1529 = vmatprep.subr.mxu0 0.0
        %1530 = vmatpush1.msra.mxu0 0.0
        %1531 = vmatprep.subr.mxu0 0.0
        %1532 = vmatpush1.msra.mxu0 0.0
        %1533 = vmatprep.subr.mxu0 0.0
        %1534 = vmatpush1.msra.mxu0 0.0
        %1535 = vmatprep.subr.mxu0 0.0
        %1536 = vmatpush1.msra.mxu0 0.0
        %1537 = vmatprep.subr.mxu0 0.0
        %1538 = vmatpush1.msra.mxu0 0.0
        %1539 = vmatprep.subr.mxu0 0.0
        %1540 = vmatpush1.msra.mxu0 0.0
        %1541 = vmatprep.subr.mxu0 0.0
        %1542 = vmatpush1.msra.mxu0 0.0
        %1543 = vmatprep.subr.mxu0 0.0
        %1544 = vmatpush1.msra.mxu0 0.0
        %1545 = vmatprep.subr.mxu0 0.0
        %1546 = vmatpush1.msra.mxu0 0.0
        %1547 = vmatprep.subr.mxu0 0.0
        %1548 = vmatpush1.msra.mxu0 0.0
        %1549 = vmatprep.subr.mxu0 0.0
        %1550 = vmatpush1.msra.mxu0 0.0
        %1551 = vmatprep.subr.mxu0 0.0
        %1552 = vmatpush1.msra.mxu0 0.0
        %1553 = vmatprep.subr.mxu0 0.0
        %1554 = vmatpush1.msra.mxu0 0.0
        %1555 = vmatprep.subr.mxu0 0.0
        %1556 = vmatpush1.msra.mxu0 0.0
        %1557 = vmatprep.subr.mxu0 0.0
        %1558 = vmatpush1.msra.mxu0 0.0
        %1559 = vmatprep.subr.mxu0 0.0
        %1560 = vmatpush1.msra.mxu0 0.0
        %1561 = vmatprep.subr.mxu0 0.0
        %1562 = vmatpush1.msra.mxu0 0.0
        %1563 = vmatprep.subr.mxu0 0.0
        %1564 = vmatpush1.msra.mxu0 0.0
        %1565 = vmatprep.subr.mxu0 0.0
        %1566 = vmatpush1.msra.mxu0 0.0
        %1567 = vmatprep.subr.mxu0 0.0
        %1568 = vmatpush1.msra.mxu0 0.0
        %1569 = vmatprep.subr.mxu0 0.0
        %1570 = vmatpush1.msra.mxu0 0.0
        %1571 = vmatprep.mubr.f32.mxu0 0.0
        %1572 = vmatmul.mubr.f32.gmra.mrb[0].mxu0 %v1505
        %v1573 = vpop.f32.mrb[0].mxu0
        %v1574 = vadd.f32 0.0, %v1573
        %v1575 = vpop.f32.mrb[0].mxu0
        %1576 = vdwg.mxu0
        %v1578 = vsel %vm936, %v1574, 0
        %1580 = vmatprep.subr.mxu0 0.0
        %1581 = vmatpush1.msra.mxu0 %v931
        %1582 = vmatprep.subr.mxu0 0.0
        %1583 = vmatpush1.msra.mxu0 0.0
        %1584 = vmatprep.subr.mxu0 0.0
        %1585 = vmatpush1.msra.mxu0 0.0
        %1586 = vmatprep.subr.mxu0 0.0
        %1587 = vmatpush1.msra.mxu0 0.0
        %1588 = vmatprep.subr.mxu0 0.0
        %1589 = vmatpush1.msra.mxu0 0.0
        %1590 = vmatprep.subr.mxu0 0.0
        %1591 = vmatpush1.msra.mxu0 0.0
        %1592 = vmatprep.subr.mxu0 0.0
        %1593 = vmatpush1.msra.mxu0 0.0
        %1594 = vmatprep.subr.mxu0 0.0
        %1595 = vmatpush1.msra.mxu0 0.0
        %1596 = vmatprep.subr.mxu0 0.0
        %1597 = vmatpush1.msra.mxu0 0.0
        %1598 = vmatprep.subr.mxu0 0.0
        %1599 = vmatpush1.msra.mxu0 0.0
        %1600 = vmatprep.subr.mxu0 0.0
        %1601 = vmatpush1.msra.mxu0 0.0
        %1602 = vmatprep.subr.mxu0 0.0
        %1603 = vmatpush1.msra.mxu0 0.0
        %1604 = vmatprep.subr.mxu0 0.0
        %1605 = vmatpush1.msra.mxu0 0.0
        %1606 = vmatprep.subr.mxu0 0.0
        %1607 = vmatpush1.msra.mxu0 0.0
        %1608 = vmatprep.subr.mxu0 0.0
        %1609 = vmatpush1.msra.mxu0 0.0
        %1610 = vmatprep.subr.mxu0 0.0
        %1611 = vmatpush1.msra.mxu0 0.0
        %1612 = vmatprep.subr.mxu0 0.0
        %1613 = vmatpush1.msra.mxu0 0.0
        %1614 = vmatprep.subr.mxu0 0.0
        %1615 = vmatpush1.msra.mxu0 0.0
        %1616 = vmatprep.subr.mxu0 0.0
        %1617 = vmatpush1.msra.mxu0 0.0
        %1618 = vmatprep.subr.mxu0 0.0
        %1619 = vmatpush1.msra.mxu0 0.0
        %1620 = vmatprep.subr.mxu0 0.0
        %1621 = vmatpush1.msra.mxu0 0.0
        %1622 = vmatprep.subr.mxu0 0.0
        %1623 = vmatpush1.msra.mxu0 0.0
        %1624 = vmatprep.subr.mxu0 0.0
        %1625 = vmatpush1.msra.mxu0 0.0
        %1626 = vmatprep.subr.mxu0 0.0
        %1627 = vmatpush1.msra.mxu0 0.0
        %1628 = vmatprep.subr.mxu0 0.0
        %1629 = vmatpush1.msra.mxu0 0.0
        %1630 = vmatprep.subr.mxu0 0.0
        %1631 = vmatpush1.msra.mxu0 0.0
        %1632 = vmatprep.subr.mxu0 0.0
        %1633 = vmatpush1.msra.mxu0 0.0
        %1634 = vmatprep.subr.mxu0 0.0
        %1635 = vmatpush1.msra.mxu0 0.0
        %1636 = vmatprep.subr.mxu0 0.0
        %1637 = vmatpush1.msra.mxu0 0.0
        %1638 = vmatprep.subr.mxu0 0.0
        %1639 = vmatpush1.msra.mxu0 0.0
        %1640 = vmatprep.subr.mxu0 0.0
        %1641 = vmatpush1.msra.mxu0 0.0
        %1642 = vmatprep.subr.mxu0 0.0
        %1643 = vmatpush1.msra.mxu0 0.0
        %1644 = vmatprep.mubr.f32.mxu0 0.0
        %1645 = vmatmul.mubr.f32.gmra.mrb[0].mxu0 %v1578
        %v1646 = vpop.f32.mrb[0].mxu0
        %v1647 = vadd.f32 0.0, %v1646
        %v1648 = vpop.f32.mrb[0].mxu0
        %1649 = vdwg.mxu0
        %v1650 = vadd.f32 %v1408, %v1647
        %1651 = vrot.lane.b32.xlu0 %v926, 104
        %v1652 = vpop.permute.xlu0 %1651
        %1653 = vrot.lane.b32.xlu0 %v926, 72
        %v1654 = vpop.permute.xlu0 %1653
        %v1655 = vsel %vm936, %v1652, 0
        %v1657 = vsel %vm936, %v1654, 0
        %1659 = vmatprep.subr.mxu0 0.0
        %1660 = vmatpush1.xpose.msra.mxu0 %v1657
        %1661 = vmatprep.subr.mxu0 0.0
        %1662 = vmatpush1.xpose.msra.mxu0 0.0
        %1663 = vmatprep.subr.mxu0 0.0
        %1664 = vmatpush1.xpose.msra.mxu0 0.0
        %1665 = vmatprep.subr.mxu0 0.0
        %1666 = vmatpush1.xpose.msra.mxu0 0.0
        %1667 = vmatprep.subr.mxu0 0.0
        %1668 = vmatpush1.xpose.msra.mxu0 0.0
        %1669 = vmatprep.subr.mxu0 0.0
        %1670 = vmatpush1.xpose.msra.mxu0 0.0
        %1671 = vmatprep.subr.mxu0 0.0
        %1672 = vmatpush1.xpose.msra.mxu0 0.0
        %1673 = vmatprep.subr.mxu0 0.0
        %1674 = vmatpush1.xpose.msra.mxu0 0.0
        %1675 = vmatprep.subr.mxu0 0.0
        %1676 = vmatpush1.xpose.msra.mxu0 0.0
        %1677 = vmatprep.subr.mxu0 0.0
        %1678 = vmatpush1.xpose.msra.mxu0 0.0
        %1679 = vmatprep.subr.mxu0 0.0
        %1680 = vmatpush1.xpose.msra.mxu0 0.0
        %1681 = vmatprep.subr.mxu0 0.0
        %1682 = vmatpush1.xpose.msra.mxu0 0.0
        %1683 = vmatprep.subr.mxu0 0.0
        %1684 = vmatpush1.xpose.msra.mxu0 0.0
        %1685 = vmatprep.subr.mxu0 0.0
        %1686 = vmatpush1.xpose.msra.mxu0 0.0
        %1687 = vmatprep.subr.mxu0 0.0
        %1688 = vmatpush1.xpose.msra.mxu0 0.0
        %1689 = vmatprep.subr.mxu0 0.0
        %1690 = vmatpush1.xpose.msra.mxu0 0.0
        %1691 = vmatprep.subr.mxu0 0.0
        %1692 = vmatpush1.xpose.msra.mxu0 0.0
        %1693 = vmatprep.subr.mxu0 0.0
        %1694 = vmatpush1.xpose.msra.mxu0 0.0
        %1695 = vmatprep.subr.mxu0 0.0
        %1696 = vmatpush1.xpose.msra.mxu0 0.0
        %1697 = vmatprep.subr.mxu0 0.0
        %1698 = vmatpush1.xpose.msra.mxu0 0.0
        %1699 = vmatprep.subr.mxu0 0.0
        %1700 = vmatpush1.xpose.msra.mxu0 0.0
        %1701 = vmatprep.subr.mxu0 0.0
        %1702 = vmatpush1.xpose.msra.mxu0 0.0
        %1703 = vmatprep.subr.mxu0 0.0
        %1704 = vmatpush1.xpose.msra.mxu0 0.0
        %1705 = vmatprep.subr.mxu0 0.0
        %1706 = vmatpush1.xpose.msra.mxu0 0.0
        %1707 = vmatprep.subr.mxu0 0.0
        %1708 = vmatpush1.xpose.msra.mxu0 0.0
        %1709 = vmatprep.subr.mxu0 0.0
        %1710 = vmatpush1.xpose.msra.mxu0 0.0
        %1711 = vmatprep.subr.mxu0 0.0
        %1712 = vmatpush1.xpose.msra.mxu0 0.0
        %1713 = vmatprep.subr.mxu0 0.0
        %1714 = vmatpush1.xpose.msra.mxu0 0.0
        %1715 = vmatprep.subr.mxu0 0.0
        %1716 = vmatpush1.xpose.msra.mxu0 0.0
        %1717 = vmatprep.subr.mxu0 0.0
        %1718 = vmatpush1.xpose.msra.mxu0 0.0
        %1719 = vmatprep.subr.mxu0 0.0
        %1720 = vmatpush1.xpose.msra.mxu0 0.0
        %1721 = vmatprep.subr.mxu0 0.0
        %1722 = vmatpush1.xpose.msra.mxu0 0.0
        %1723 = vmatprep.mubr.f32.mxu0 0.0
        %1724 = vmatmul.mubr.f32.gmra.mrb[0].mxu0 %v1655
        %v1725 = vpop.f32.mrb[0].mxu0
        %v1726 = vadd.f32 0.0, %v1725
        %v1727 = vpop.f32.mrb[0].mxu0
        %1728 = vdwg.mxu0
        %v1729 = vmul.f32 %v1726, 0.35355338
        %v1730 = vsel %vm936, %v1729, -inf
        %1731 = vmax.xlane.f32.xlu0 %v1730
        %v1732 = vpop.xlane.xlu0 %1731
        %v1733 = vsub.f32 %v1729, %v1732
        %v1734 = vmul.f32 %v1733, 1.442695
        %v1735 = vpow.pop %v1734
        %v1736 = vsel %vm936, %v1735, 0.0
        %1737 = vadd.xlane.f32.xlu0 %v1736
        %v1738 = vpop.xlane.xlu0 %1737
        %v1739 = vrcp.pop %v1738
        %v1740 = vmul.f32 %v1735, %v1739
        %1741 = vrot.lane.b32.xlu0 %v926, 40
        %v1742 = vpop.permute.xlu0 %1741
        %v1745 = vsel %vm936, %v1740, 0
        %1747 = vmatprep.subr.mxu0 0.0
        %1748 = vmatpush1.msra.mxu0 %v1742
        %1749 = vmatprep.subr.mxu0 0.0
        %1750 = vmatpush1.msra.mxu0 0.0
        %1751 = vmatprep.subr.mxu0 0.0
        %1752 = vmatpush1.msra.mxu0 0.0
        %1753 = vmatprep.subr.mxu0 0.0
        %1754 = vmatpush1.msra.mxu0 0.0
        %1755 = vmatprep.subr.mxu0 0.0
        %1756 = vmatpush1.msra.mxu0 0.0
        %1757 = vmatprep.subr.mxu0 0.0
        %1758 = vmatpush1.msra.mxu0 0.0
        %1759 = vmatprep.subr.mxu0 0.0
        %1760 = vmatpush1.msra.mxu0 0.0
        %1761 = vmatprep.subr.mxu0 0.0
        %1762 = vmatpush1.msra.mxu0 0.0
        %1763 = vmatprep.subr.mxu0 0.0
        %1764 = vmatpush1.msra.mxu0 0.0
        %1765 = vmatprep.subr.mxu0 0.0
        %1766 = vmatpush1.msra.mxu0 0.0
        %1767 = vmatprep.subr.mxu0 0.0
        %1768 = vmatpush1.msra.mxu0 0.0
        %1769 = vmatprep.subr.mxu0 0.0
        %1770 = vmatpush1.msra.mxu0 0.0
        %1771 = vmatprep.subr.mxu0 0.0
        %1772 = vmatpush1.msra.mxu0 0.0
        %1773 = vmatprep.subr.mxu0 0.0
        %1774 = vmatpush1.msra.mxu0 0.0
        %1775 = vmatprep.subr.mxu0 0.0
        %1776 = vmatpush1.msra.mxu0 0.0
        %1777 = vmatprep.subr.mxu0 0.0
        %1778 = vmatpush1.msra.mxu0 0.0
        %1779 = vmatprep.subr.mxu0 0.0
        %1780 = vmatpush1.msra.mxu0 0.0
        %1781 = vmatprep.subr.mxu0 0.0
        %1782 = vmatpush1.msra.mxu0 0.0
        %1783 = vmatprep.subr.mxu0 0.0
        %1784 = vmatpush1.msra.mxu0 0.0
        %1785 = vmatprep.subr.mxu0 0.0
        %1786 = vmatpush1.msra.mxu0 0.0
        %1787 = vmatprep.subr.mxu0 0.0
        %1788 = vmatpush1.msra.mxu0 0.0
        %1789 = vmatprep.subr.mxu0 0.0
        %1790 = vmatpush1.msra.mxu0 0.0
        %1791 = vmatprep.subr.mxu0 0.0
        %1792 = vmatpush1.msra.mxu0 0.0
        %1793 = vmatprep.subr.mxu0 0.0
        %1794 = vmatpush1.msra.mxu0 0.0
        %1795 = vmatprep.subr.mxu0 0.0
        %1796 = vmatpush1.msra.mxu0 0.0
        %1797 = vmatprep.subr.mxu0 0.0
        %1798 = vmatpush1.msra.mxu0 0.0
        %1799 = vmatprep.subr.mxu0 0.0
        %1800 = vmatpush1.msra.mxu0 0.0
        %1801 = vmatprep.subr.mxu0 0.0
        %1802 = vmatpush1.msra.mxu0 0.0
        %1803 = vmatprep.subr.mxu0 0.0
        %1804 = vmatpush1.msra.mxu0 0.0
        %1805 = vmatprep.subr.mxu0 0.0
        %1806 = vmatpush1.msra.mxu0 0.0
        %1807 = vmatprep.subr.mxu0 0.0
        %1808 = vmatpush1.msra.mxu0 0.0
        %1809 = vmatprep.subr.mxu0 0.0
        %1810 = vmatpush1.msra.mxu0 0.0
        %1811 = vmatprep.mubr.f32.mxu0 0.0
        %1812 = vmatmul.mubr.f32.gmra.mrb[0].mxu0 %v1745
        %v1813 = vpop.f32.mrb[0].mxu0
        %v1814 = vadd.f32 0.0, %v1813
        %v1815 = vpop.f32.mrb[0].mxu0
        %1816 = vdwg.mxu0
        %v1818 = vsel %vm936, %v1814, 0
        %1820 = vmatprep.subr.mxu0 0.0
        %1821 = vmatpush1.msra.mxu0 %v932
        %1822 = vmatprep.subr.mxu0 0.0
        %1823 = vmatpush1.msra.mxu0 0.0
        %1824 = vmatprep.subr.mxu0 0.0
        %1825 = vmatpush1.msra.mxu0 0.0
        %1826 = vmatprep.subr.mxu0 0.0
        %1827 = vmatpush1.msra.mxu0 0.0
        %1828 = vmatprep.subr.mxu0 0.0
        %1829 = vmatpush1.msra.mxu0 0.0
        %1830 = vmatprep.subr.mxu0 0.0
        %1831 = vmatpush1.msra.mxu0 0.0
        %1832 = vmatprep.subr.mxu0 0.0
        %1833 = vmatpush1.msra.mxu0 0.0
        %1834 = vmatprep.subr.mxu0 0.0
        %1835 = vmatpush1.msra.mxu0 0.0
        %1836 = vmatprep.subr.mxu0 0.0
        %1837 = vmatpush1.msra.mxu0 0.0
        %1838 = vmatprep.subr.mxu0 0.0
        %1839 = vmatpush1.msra.mxu0 0.0
        %1840 = vmatprep.subr.mxu0 0.0
        %1841 = vmatpush1.msra.mxu0 0.0
        %1842 = vmatprep.subr.mxu0 0.0
        %1843 = vmatpush1.msra.mxu0 0.0
        %1844 = vmatprep.subr.mxu0 0.0
        %1845 = vmatpush1.msra.mxu0 0.0
        %1846 = vmatprep.subr.mxu0 0.0
        %1847 = vmatpush1.msra.mxu0 0.0
        %1848 = vmatprep.subr.mxu0 0.0
        %1849 = vmatpush1.msra.mxu0 0.0
        %1850 = vmatprep.subr.mxu0 0.0
        %1851 = vmatpush1.msra.mxu0 0.0
        %1852 = vmatprep.subr.mxu0 0.0
        %1853 = vmatpush1.msra.mxu0 0.0
        %1854 = vmatprep.subr.mxu0 0.0
        %1855 = vmatpush1.msra.mxu0 0.0
        %1856 = vmatprep.subr.mxu0 0.0
        %1857 = vmatpush1.msra.mxu0 0.0
        %1858 = vmatprep.subr.mxu0 0.0
        %1859 = vmatpush1.msra.mxu0 0.0
        %1860 = vmatprep.subr.mxu0 0.0
        %1861 = vmatpush1.msra.mxu0 0.0
        %1862 = vmatprep.subr.mxu0 0.0
        %1863 = vmatpush1.msra.mxu0 0.0
        %1864 = vmatprep.subr.mxu0 0.0
        %1865 = vmatpush1.msra.mxu0 0.0
        %1866 = vmatprep.subr.mxu0 0.0
        %1867 = vmatpush1.msra.mxu0 0.0
        %1868 = vmatprep.subr.mxu0 0.0
        %1869 = vmatpush1.msra.mxu0 0.0
        %1870 = vmatprep.subr.mxu0 0.0
        %1871 = vmatpush1.msra.mxu0 0.0
        %1872 = vmatprep.subr.mxu0 0.0
        %1873 = vmatpush1.msra.mxu0 0.0
        %1874 = vmatprep.subr.mxu0 0.0
        %1875 = vmatpush1.msra.mxu0 0.0
        %1876 = vmatprep.subr.mxu0 0.0
        %1877 = vmatpush1.msra.mxu0 0.0
        %1878 = vmatprep.subr.mxu0 0.0
        %1879 = vmatpush1.msra.mxu0 0.0
        %1880 = vmatprep.subr.mxu0 0.0
        %1881 = vmatpush1.msra.mxu0 0.0
        %1882 = vmatprep.subr.mxu0 0.0
        %1883 = vmatpush1.msra.mxu0 0.0
        %1884 = vmatprep.mubr.f32.mxu0 0.0
        %1885 = vmatmul.mubr.f32.gmra.mrb[0].mxu0 %v1818
        %v1886 = vpop.f32.mrb[0].mxu0
        %v1887 = vadd.f32 0.0, %v1886
        %v1888 = vpop.f32.mrb[0].mxu0
        %1889 = vdwg.mxu0
        %v1890 = vadd.f32 %v1650, %v1887
        %v1891 = vld [vmem:[%s9] sm:$0x1]
        %v1893 = vlaneseq
        %v1894 = vshrl.u32 %v1893, 7
        %v1895 = vsub.s32 0, %v1894
        %v1896 = vrot.slane %v1891, %v1895
        %v1898 = vadd.f32 %v1890, %v1896
        %v1899 = vld [vmem:[%s10] sm:$0x1]
        %v1900 = vld [vmem:[%s11] sm:$0x1]
        %v1901 = vadd.f32 %v1898, %v841
        %v1902 = vsel %vm855, %v1901, 0.0
        %1903 = vadd.xlane.f32.xlu0 %v1902
        %v1904 = vpop.xlane.xlu0 %1903
        %v1905 = vrcp.pop 32.0
        %v1906 = vmul.f32 %v1904, %v1905
        %v1907 = vsub.f32 %v1901, %v1906
        %v1908 = vmul.f32 %v1907, %v1907
        %v1909 = vsel %vm855, %v1908, 0.0
        %1910 = vadd.xlane.f32.xlu0 %v1909
        %v1911 = vpop.xlane.xlu0 %1910
        %v1912 = vmul.f32 %v1911, %v1905
        %v1913 = vadd.f32 %v1912, 1e-05
        %v1914 = vrsqrt.pop %v1913
        %v1915 = vmul.f32 %v1907, %v1914
        %v1917 = vlaneseq
        %v1918 = vshrl.u32 %v1917, 7
        %v1919 = vsub.s32 0, %v1918
        %v1920 = vrot.slane %v1899, %v1919
        %v1922 = vmul.f32 %v1915, %v1920
        %v1924 = vlaneseq
        %v1925 = vshrl.u32 %v1924, 7
        %v1926 = vsub.s32 0, %v1925
        %v1927 = vrot.slane %v1900, %v1926
        %v1929 = vadd.f32 %v1922, %v1927
        %v1930 = vld [vmem:[%s12] sm:$0xff]
        %v1931 = vld [vmem:[%s12 + $0x8] sm:$0xff]
        %v1932 = vld [vmem:[%s12 + $0x10] sm:$0xff]
        %v1933 = vld [vmem:[%s12 + $0x18] sm:$0xff]
        %v1934 = vld [vmem:[%s13] sm:$0x1]
        %v1936 = vlaneseq
        %v1937 = vshrl.u32 %v1936, 7
        %v1938 = vsub.s32 0, %v1937
        %v1939 = vrot.slane %v1934, %v1938
        %v1942 = vsel %vm855, %v1929, 0
        %1944 = vmatprep.subr.mxu0 0.0
        %1945 = vmatpush1.msra.mxu0 %v1930
        %1946 = vmatprep.subr.mxu0 0.0
        %1947 = vmatpush1.msra.mxu0 %v1931
        %1948 = vmatprep.subr.mxu0 0.0
        %1949 = vmatpush1.msra.mxu0 %v1932
        %1950 = vmatprep.subr.mxu0 0.0
        %1951 = vmatpush1.msra.mxu0 %v1933
        %1952 = vmatprep.subr.mxu0 0.0
        %1953 = vmatpush1.msra.mxu0 0.0
        %1954 = vmatprep.subr.mxu0 0.0
        %1955 = vmatpush1.msra.mxu0 0.0
        %1956 = vmatprep.subr.mxu0 0.0
        %1957 = vmatpush1.msra.mxu0 0.0
        %1958 = vmatprep.subr.mxu0 0.0
        %1959 = vmatpush1.msra.mxu0 0.0
        %1960 = vmatprep.subr.mxu0 0.0
        %1961 = vmatpush1.msra.mxu0 0.0
        %1962 = vmatprep.subr.mxu0 0.0
        %1963 = vmatpush1.msra.mxu0 0.0
        %1964 = vmatprep.subr.mxu0 0.0
        %1965 = vmatpush1.msra.mxu0 0.0
        %1966 = vmatprep.subr.mxu0 0.0
        %1967 = vmatpush1.msra.mxu0 0.0
        %1968 = vmatprep.subr.mxu0 0.0
        %1969 = vmatpush1.msra.mxu0 0.0
        %1970 = vmatprep.subr.mxu0 0.0
        %1971 = vmatpush1.msra.mxu0 0.0
        %1972 = vmatprep.subr.mxu0 0.0
        %1973 = vmatpush1.msra.mxu0 0.0
        %1974 = vmatprep.subr.mxu0 0.0
        %1975 = vmatpush1.msra.mxu0 0.0
        %1976 = vmatprep.subr.mxu0 0.0
        %1977 = vmatpush1.msra.mxu0 0.0
        %1978 = vmatprep.subr.mxu0 0.0
        %1979 = vmatpush1.msra.mxu0 0.0
        %1980 = vmatprep.subr.mxu0 0.0
        %1981 = vmatpush1.msra.mxu0 0.0
        %1982 = vmatprep.subr.mxu0 0.0
        %1983 = vmatpush1.msra.mxu0 0.0
        %1984 = vmatprep.subr.mxu0 0.0
        %1985 = vmatpush1.msra.mxu0 0.0
        %1986 = vmatprep.subr.mxu0 0.0
        %1987 = vmatpush1.msra.mxu0 0.0
        %1988 = vmatprep.subr.mxu0 0.0
        %1989 = vmatpush1.msra.mxu0 0.0
        %1990 = vmatprep.subr.mxu0 0.0
        %1991 = vmatpush1.msra.mxu0 0.0
        %1992 = vmatprep.subr.mxu0 0.0
        %1993 = vmatpush1.msra.mxu0 0.0
        %1994 = vmatprep.subr.mxu0 0.0
        %1995 = vmatpush1.msra.mxu0 0.0
        %1996 = vmatprep.subr.mxu0 0.0
        %1997 = vmatpush1.msra.mxu0 0.0
        %1998 = vmatprep.subr.mxu0 0.0
        %1999 = vmatpush1.msra.mxu0 0.0
        %2000 = vmatprep.subr.mxu0 0.0
        %2001 = vmatpush1.msra.mxu0 0.0
        %2002 = vmatprep.subr.mxu0 0.0
        %2003 = vmatpush1.msra.mxu0 0.0
        %2004 = vmatprep.subr.mxu0 0.0
        %2005 = vmatpush1.msra.mxu0 0.0
        %2006 = vmatprep.subr.mxu0 0.0
        %2007 = vmatpush1.msra.mxu0 0.0
        %2008 = vmatprep.mubr.f32.mxu0 0.0
        %2009 = vmatmul.mubr.f32.gmra.mrb[0].mxu0 %v1942
        %v2010 = vpop.f32.mrb[0].mxu0
        %v2011 = vadd.f32 %v1939, %v2010
        %v2012 = vpop.f32.mrb[0].mxu0
        %2013 = vdwg.mxu0
        %v2014 = vmax.f32 %v2011, 0.0
        %v2015 = vld [vmem:[#allocation13] sm:$0xff]
        %v2016 = vld [vmem:[#allocation13 + $0x8] sm:$0xff]
        %v2017 = vld [vmem:[#allocation13 + $0x10] sm:$0xff]
        %v2018 = vld [vmem:[#allocation13 + $0x18] sm:$0xff]
        %v2019 = vld [vmem:[%s15] sm:$0x1]
        %v2021 = vlaneseq
        %v2022 = vshrl.u32 %v2021, 7
        %v2023 = vsub.s32 0, %v2022
        %v2024 = vrot.slane %v2019, %v2023
        %v2027 = vsel %vm855, %v2014, 0
        %2029 = vmatprep.subr.mxu0 0.0
        %2030 = vmatpush1.msra.mxu0 %v2015
        %2031 = vmatprep.subr.mxu0 0.0
        %2032 = vmatpush1.msra.mxu0 %v2016
        %2033 = vmatprep.subr.mxu0 0.0
        %2034 = vmatpush1.msra.mxu0 %v2017
        %2035 = vmatprep.subr.mxu0 0.0
        %2036 = vmatpush1.msra.mxu0 %v2018
        %2037 = vmatprep.subr.mxu0 0.0
        %2038 = vmatpush1.msra.mxu0 0.0
        %2039 = vmatprep.subr.mxu0 0.0
        %2040 = vmatpush1.msra.mxu0 0.0
        %2041 = vmatprep.subr.mxu0 0.0
        %2042 = vmatpush1.msra.mxu0 0.0
        %2043 = vmatprep.subr.mxu0 0.0
        %2044 = vmatpush1.msra.mxu0 0.0
        %2045 = vmatprep.subr.mxu0 0.0
        %2046 = vmatpush1.msra.mxu0 0.0
        %2047 = vmatprep.subr.mxu0 0.0
        %2048 = vmatpush1.msra.mxu0 0.0
        %2049 = vmatprep.subr.mxu0 0.0
        %2050 = vmatpush1.msra.mxu0 0.0
        %2051 = vmatprep.subr.mxu0 0.0
        %2052 = vmatpush1.msra.mxu0 0.0
        %2053 = vmatprep.subr.mxu0 0.0
        %2054 = vmatpush1.msra.mxu0 0.0
        %2055 = vmatprep.subr.mxu0 0.0
        %2056 = vmatpush1.msra.mxu0 0.0
        %2057 = vmatprep.subr.mxu0 0.0
        %2058 = vmatpush1.msra.mxu0 0.0
        %2059 = vmatprep.subr.mxu0 0.0
        %2060 = vmatpush1.msra.mxu0 0.0
        %2061 = vmatprep.subr.mxu0 0.0
        %2062 = vmatpush1.msra.mxu0 0.0
        %2063 = vmatprep.subr.mxu0 0.0
        %2064 = vmatpush1.msra.mxu0 0.0
        %2065 = vmatprep.subr.mxu0 0.0
        %2066 = vmatpush1.msra.mxu0 0.0
        %2067 = vmatprep.subr.mxu0 0.0
        %2068 = vmatpush1.msra.mxu0 0.0
        %2069 = vmatprep.subr.mxu0 0.0
        %2070 = vmatpush1.msra.mxu0 0.0
        %2071 = vmatprep.subr.mxu0 0.0
        %2072 = vmatpush1.msra.mxu0 0.0
        %2073 = vmatprep.subr.mxu0 0.0
        %2074 = vmatpush1.msra.mxu0 0.0
        %2075 = vmatprep.subr.mxu0 0.0
        %2076 = vmatpush1.msra.mxu0 0.0
        %2077 = vmatprep.subr.mxu0 0.0
        %2078 = vmatpush1.msra.mxu0 0.0
        %2079 = vmatprep.subr.mxu0 0.0
        %2080 = vmatpush1.msra.mxu0 0.0
        %2081 = vmatprep.subr.mxu0 0.0
        %2082 = vmatpush1.msra.mxu0 0.0
        %2083 = vmatprep.subr.mxu0 0.0
        %2084 = vmatpush1.msra.mxu0 0.0
        %2085 = vmatprep.subr.mxu0 0.0
        %2086 = vmatpush1.msra.mxu0 0.0
        %2087 = vmatprep.subr.mxu0 0.0
        %2088 = vmatpush1.msra.mxu0 0.0
        %2089 = vmatprep.subr.mxu0 0.0
        %2090 = vmatpush1.msra.mxu0 0.0
        %2091 = vmatprep.subr.mxu0 0.0
        %2092 = vmatpush1.msra.mxu0 0.0
        %2093 = vmatprep.mubr.f32.mxu0 0.0
        %2094 = vmatmul.mubr.f32.gmra.mrb[0].mxu0 %v2027
        %v2095 = vpop.f32.mrb[0].mxu0
        %v2096 = vadd.f32 %v2024, %v2095
        %v2097 = vpop.f32.mrb[0].mxu0
        %2098 = vdwg.mxu0
        %v2099 = vld [vmem:[%s16] sm:$0x1]
        %v2100 = vld [vmem:[%s17] sm:$0x1]
        %v2101 = vadd.f32 %v2096, %v1929
        %v2102 = vsel %vm855, %v2101, 0.0
        %2103 = vadd.xlane.f32.xlu0 %v2102
        %v2104 = vpop.xlane.xlu0 %2103
        %v2105 = vmul.f32 %v2104, %v1905
        %v2106 = vsub.f32 %v2101, %v2105
        %v2107 = vmul.f32 %v2106, %v2106
        %v2108 = vsel %vm855, %v2107, 0.0
        %2109 = vadd.xlane.f32.xlu0 %v2108
        %v2110 = vpop.xlane.xlu0 %2109
        %v2111 = vmul.f32 %v2110, %v1905
        %v2112 = vadd.f32 %v2111, 1e-05
        %v2113 = vrsqrt.pop %v2112
        %v2114 = vmul.f32 %v2106, %v2113
        %v2116 = vlaneseq
        %v2117 = vshrl.u32 %v2116, 7
        %v2118 = vsub.s32 0, %v2117
        %v2119 = vrot.slane %v2099, %v2118
        %v2121 = vmul.f32 %v2114, %v2119
        %v2123 = vlaneseq
        %v2124 = vshrl.u32 %v2123, 7
        %v2125 = vsub.s32 0, %v2124
        %v2126 = vrot.slane %v2100, %v2125
        %v2128 = vadd.f32 %v2121, %v2126
        %2129 = vst.msk [vmem:[%s675] sm:$0xff] %vm855, %v2128
        %s2130 = sand.u32 %s429, 1
        %s2131 = scalar_lea.sflag [#allocation4], %s2130
        %s2132 = sand.u32 %s429, 1
        %s2133 = smul.addr %s2132, 8
        %s2134 = scalar_lea.vmem [#allocation14], %s2133
        // Predicated region
        $region121: #{tpu_custom_call.1} parent=91 // pred_check
          %p2135 = pneg %p439
        $region122: #{tpu_custom_call.1} parent=91 // pred_check_branch
          %2137 = sbr.rel (%p2135) target = $region124
        $region123: #{tpu_custom_call.1} parent=91 // pred_region
          %s2139 = ssub.s32 128, 128
          %2140 = vsyncadd %s2131, %s2139
          %s2141 = smul.addr %s38, 128
          %s2142 = scalar_lea.hbm %s18, %s2141
          %s2144 = sshll.u32 %s2134, 4
          %s2145 = int_to_ptr.vmem [resolvable:$true] %s2144
          %2147 = dma.vmem_to_hbm [thread:$0]  %s2145, 128, %s2142, %s2131
        $region124: #{tpu_custom_call.1} parent=91 // pred_fallthru
          _
      $region92: #{tpu_custom_call.1} parent=5 // pred_fallthru
        _
      %p2148 = scmp.le.s32.totalorder 2, %s33
      // Predicated region
      $region125: #{tpu_custom_call.1} parent=5 // pred_check
        %p2149 = pneg %p2148
      $region126: #{tpu_custom_call.1} parent=5 // pred_check_branch
        %2151 = sbr.rel (%p2149) target = $region128
      $region127: #{tpu_custom_call.1} parent=5 // pred_region
        %s2152 = ssub.s32 %s33, 2
        // Predicated region
        $region129: #{tpu_custom_call.1} parent=127 // pred_check
          %p2153 = pneg %p445
        $region130: #{tpu_custom_call.1} parent=127 // pred_check_branch
          %2155 = sbr.rel (%p2153) target = $region132
        $region131: #{tpu_custom_call.1} parent=127 // pred_region
          %s2156 = sand.u32 %s430, 1
          %s2157 = scalar_lea.sflag [#allocation4], %s2156
          %s2158 = sand.u32 %s430, 1
          %s2159 = smul.addr %s2158, 8
          %s2160 = scalar_lea.vmem [#allocation14], %s2159
          %2161 = dma.done %s2157, 128
        $region132: #{tpu_custom_call.1} parent=127 // pred_fallthru
          _
      $region128: #{tpu_custom_call.1} parent=5 // pred_fallthru
        _
    $region6: #{tpu_custom_call.1} parent=1 // loop_footer
      %s37 = sadd.s32 1, %s33
    $region7: #{tpu_custom_call.1} parent=1 // loop_footer_branch
      %32 = sbr.rel target = $region3
    $region8: #{tpu_custom_call.1} parent=1 // loop_exit
      _
    %2162 = vsyncpa [#allocation3], 1
    %s2163 = scalar_lea.sflag [#allocation3], 1
    %2164 = vsyncpa %s2163, 1
    %2165 = vsyncpa [#allocation6], 1
    %2166 = vsyncpa [#allocation9], 1
    %2167 = vsyncpa [#allocation12], 1
    %2168 = vsyncpa [#allocation4], 1
    %s2169 = scalar_lea.sflag [#allocation4], 1
    %2170 = vsyncpa %s2169, 1

</llo_original>
